<compile_context>
chip_gen: v7x
topology: tpu7x:2x2x1
jax: 0.10.0
libtpu: 0.0.40
codegen_flags: <defaults>
</compile_context>

<pallas_src>
import functools
import math

import numpy as np
import jax
import jax.numpy as jnp
from jax.experimental import pallas as pl
from jax.experimental.pallas import tpu as pltpu


# ----------------------------------------------------------------------------
# Region enumeration (pure Python, trace-time; mirrors RMAC.rmac exactly)
# ----------------------------------------------------------------------------
def compute_rmac_regions(H, W, L=3, ovr=0.4):
    steps = np.array([2, 3, 4, 5, 6, 7], dtype=np.float32)
    w = min(W, H)
    b = (max(H, W) - w) / (steps - 1)
    idx = int(np.argmin(np.abs((w * w - w * b) / np.float32(w * w) - np.float32(ovr))))
    Wd = 0
    Hd = 0
    if H < W:
        Wd = idx + 1
    elif H > W:
        Hd = idx + 1

    regions = []  # list of (h0, w0, wl)
    for l in range(1, L + 1):
        wl = math.floor(2 * w / (l + 1))
        wl2 = math.floor(wl / 2 - 1)

        if l + Wd == 1:
            b = 0.0
        else:
            b = (W - wl) / (l + Wd - 1)
        cenW = np.floor(np.float32(wl2) +
                        np.arange(l - 1 + Wd + 1, dtype=np.float32) * np.float32(b)) - wl2

        if l + Hd == 1:
            b = 0.0
        else:
            b = (H - wl) / (l + Hd - 1)
        cenH = np.floor(np.float32(wl2) +
                        np.arange(l - 1 + Hd + 1, dtype=np.float32) * np.float32(b)) - wl2

        for i_ in cenH.tolist():
            for j_ in cenW.tolist():
                if wl == 0:
                    continue
                regions.append((int(i_), int(j_), int(wl)))
    return regions


# ----------------------------------------------------------------------------
# Pallas kernel: one grid step = one batch tile, all regions folded inside.
# All region parameters are static Python ints (baked in at trace time).
# ----------------------------------------------------------------------------
def _rmac_kernel(x_ref, o_ref, *, regions, eps):
    # x_ref: (B_TILE, H, W, C) in VMEM (C on lanes, W on sublanes)
    # o_ref: (B_TILE, C)
    acc = None  # register-resident; B_TILE is sized so this is <= ~16 vregs
    for (h0, w0, hl, wl) in regions:
        # Static window slice: loads only the (B_TILE, hl, wl, C) window.
        win = x_ref[:, h0:h0 + hl, w0:w0 + wl, :]
        # Max over H first (pure VPU, cross-vreg), then one cross-sublane (XLU)
        # max over the much smaller (B_TILE, wl, C) tensor.  Max runs in the
        # input dtype; only the (B_TILE, C) result is promoted to f32.
        vt = jnp.max(jnp.max(win, axis=1), axis=1).astype(jnp.float32)
        # Channel-wise L2 norm in f32 (matches torch.norm(p=2, dim=1) + eps).
        ssq = jnp.sum(vt * vt, axis=-1, keepdims=True)            # (B_TILE, 1)
        inv = pl.reciprocal(jnp.sqrt(ssq) + eps, approx=False)    # EUP slot
        vn = vt * inv
        acc = vn if acc is None else acc + vn
    o_ref[...] = acc.astype(o_ref.dtype)


# ----------------------------------------------------------------------------
# Generation-aware tiling helpers
# ----------------------------------------------------------------------------
def _vmem_capacity_bytes():
    try:
        cap = int(pltpu.get_tpu_info().vmem_capacity_bytes)
        if cap > 0:
            return cap
    except Exception:
        pass
    return 64 * 2**20  # conservative fallback (v7x physical VMEM)


def _pick_b_tile(B, H, W, C, in_itemsize, out_itemsize, vmem_cap):
    # (a) double-buffered input slab + double-buffered output + headroom must
    #     stay well under physical VMEM (~45% leaves room for compiler scratch).
    budget = int(0.45 * vmem_cap)
    per_b = 2 * H * W * C * in_itemsize + 2 * C * out_itemsize + 4 * C
    vmem_tile = max(1, budget // max(per_b, 1))
    # (b) keep the f32 accumulator (and per-region temporaries) <= ~16 vregs.
    vreg_tile = max(1, (16 * 1024) // max(C, 1))
    bt = int(min(B, vmem_tile, vreg_tile))
    if bt < B and bt >= 8:
        bt = (bt // 8) * 8  # sublane-aligned partial blocks on the output
    return max(1, bt)


# ----------------------------------------------------------------------------
# Wrappers
# ----------------------------------------------------------------------------
@functools.partial(jax.jit, static_argnames=("L", "eps", "b_tile"))
def rmac_nhwc(x_nhwc, L=3, eps=1e-6, b_tile=None):
    """x_nhwc: (B, H, W, C) -> (B, C).  Preferred entry point: no transpose."""
    B, H, W, C = x_nhwc.shape

    # Global max-pool term (whole map) + all RMAC pyramid regions.
    regions = [(0, 0, H, W)]
    regions += [(h0, w0, wl, wl) for (h0, w0, wl) in compute_rmac_regions(H, W, L=L)]

    in_itemsize = jnp.dtype(x_nhwc.dtype).itemsize
    out_dtype = x_nhwc.dtype
    out_itemsize = jnp.dtype(out_dtype).itemsize

    vmem_cap = _vmem_capacity_bytes()
    if b_tile is not None:
        bt = max(1, min(int(b_tile), B))
    else:
        bt = _pick_b_tile(B, H, W, C, in_itemsize, out_itemsize, vmem_cap)

    grid = (pl.cdiv(B, bt),)
    kernel = functools.partial(_rmac_kernel, regions=tuple(regions), eps=float(eps))

    # Advisory cost estimate: the kernel is HBM-bound (one read of x, one small
    # write of the output); flops are the max-pool compares + the norms.
    flops = 0
    for (_, _, hl, wl) in regions:
        flops += B * C * hl * wl
    flops += len(regions) * B * (2 * C + 2)
    cost = pl.CostEstimate(
        flops=int(flops),
        transcendentals=int(len(regions) * B),
        bytes_accessed=int(x_nhwc.size * in_itemsize + B * C * out_itemsize),
    )

    # VMEM limit sized to the actual double-buffered footprint, capped by the
    # physical capacity of this generation (64 MiB on v7x, 128 MiB v5e/v6e).
    needed = (2 * bt * H * W * C * in_itemsize
              + 2 * bt * C * out_itemsize
              + (2 << 20))
    vmem_limit = int(min(int(0.9 * vmem_cap), max(needed, 16 * 2**20)))

    return pl.pallas_call(
        kernel,
        out_shape=jax.ShapeDtypeStruct((B, C), out_dtype),
        grid=grid,
        in_specs=[pl.BlockSpec((bt, H, W, C), lambda i: (i, 0, 0, 0))],
        out_specs=pl.BlockSpec((bt, C), lambda i: (i, 0)),
        compiler_params=pltpu.CompilerParams(
            dimension_semantics=("parallel",),   # megacore split on v7x
            vmem_limit_bytes=vmem_limit),
        cost_estimate=cost,
    )(x_nhwc)


@functools.partial(jax.jit, static_argnames=("L", "eps", "b_tile"))
def rmac(x, L=3, eps=1e-6, b_tile=None):
    """x: (B, C, H, W) NCHW -> (B, C), matching RMAC.forward.

    The NCHW->NHWC transpose is a separate XLA op (full HBM read+write of the
    feature map); if the producing backbone can emit NHWC directly, call
    `rmac_nhwc` instead and skip it entirely.
    """
    x_nhwc = jnp.transpose(x, (0, 2, 3, 1))
    return rmac_nhwc(x_nhwc, L=L, eps=eps, b_tile=b_tile)


# ----------------------------------------------------------------------------
# Pure-numpy reference (mirrors the PyTorch RMAC.forward semantics)
# ----------------------------------------------------------------------------
def rmac_ref(x_np, L=3, eps=1e-6):
    x_np = np.asarray(x_np, dtype=np.float32)
    B, C, H, W = x_np.shape
    v = x_np.max(axis=(2, 3))
    v = v / (np.sqrt((v * v).sum(axis=1, keepdims=True)) + eps)
    for (h0, w0, wl) in compute_rmac_regions(H, W, L=L):
        Rg = x_np[:, :, h0:h0 + wl, w0:w0 + wl]
        vt = Rg.max(axis=(2, 3))
        vt = vt / (np.sqrt((vt * vt).sum(axis=1, keepdims=True)) + eps)
        v = v + vt
    return v


if __name__ == "__main__":
    key = jax.random.PRNGKey(0)
    k1, k2 = jax.random.split(key)

    # 1) Small shape consistent with the module interface (NCHW, single block).
    B, C, H, W = 2, 4, 16, 16
    x = jax.random.normal(k1, (B, C, H, W), dtype=jnp.float32)
    out = jax.block_until_ready(rmac(x, L=3, eps=1e-6))
    ref = rmac_ref(np.asarray(x), L=3, eps=1e-6)
    assert out.shape == ref.shape, (out.shape, ref.shape)
    np.testing.assert_allclose(np.asarray(out), ref, rtol=1e-5, atol=1e-5)

    # 2) Lane-dense / tiled-grid path: C a multiple of 128, B > B_TILE so the
    #    parallel batch grid (including a partial final block) is exercised.
    B2, C2, H2, W2 = 10, 256, 14, 14
    x2 = jax.random.normal(k2, (B2, C2, H2, W2), dtype=jnp.float32)
    out2 = jax.block_until_ready(rmac(x2, L=3, eps=1e-6, b_tile=8))
    ref2 = rmac_ref(np.asarray(x2), L=3, eps=1e-6)
    np.testing.assert_allclose(np.asarray(out2), ref2, rtol=1e-5, atol=1e-5)

    print("KERNEL_OK")
</pallas_src>

<mosaic_0001>
module attributes {stable_mosaic.version = 11 : i64} {
  func.func @_rmac_kernel(%arg0: i32, %arg1: memref<2x16x16x4xf32, #tpu.memory_space<vmem>>, %arg2: memref<2x4xf32, #tpu.memory_space<vmem>>) attributes {dimension_semantics = [#tpu.dimension_semantics<parallel>], iteration_bounds = array<i64: 1>, scalar_prefetch = 0 : i64, scratch_operands = 0 : i64, tpu.core_type = #tpu.core_type<tc>, window_params = [{transform_indices = @transform_0, window_bounds = array<i64: 2, 16, 16, 4>}, {transform_indices = @transform_1, window_bounds = array<i64: 2, 4>}]} {
    %c0 = arith.constant 0 : index
    %c0_0 = arith.constant 0 : index
    %c0_1 = arith.constant 0 : index
    %c0_2 = arith.constant 0 : index
    %0 = vector.load %arg1[%c0, %c0_0, %c0_1, %c0_2] : memref<2x16x16x4xf32, #tpu.memory_space<vmem>>, vector<2x16x16x4xf32>
    %cst = arith.constant dense<0xFF800000> : vector<2x16x4xf32>
    %1 = vector.multi_reduction <maximumf>, %0, %cst [1] : vector<2x16x16x4xf32> to vector<2x16x4xf32>
    %cst_3 = arith.constant dense<0xFF800000> : vector<2x4xf32>
    %2 = vector.multi_reduction <maximumf>, %1, %cst_3 [1] : vector<2x16x4xf32> to vector<2x4xf32>
    %3 = arith.mulf %2, %2 : vector<2x4xf32>
    %cst_4 = arith.constant dense<0.000000e+00> : vector<2xf32>
    %4 = vector.multi_reduction <add>, %3, %cst_4 [1] : vector<2x4xf32> to vector<2xf32>
    %5 = vector.shape_cast %4 : vector<2xf32> to vector<2x1xf32>
    %6 = math.sqrt %5 : vector<2x1xf32>
    %cst_5 = arith.constant 9.99999997E-7 : f32
    %7 = vector.broadcast %cst_5 : f32 to vector<2x1xf32>
    %8 = arith.addf %6, %7 : vector<2x1xf32>
    %9 = tpu.reciprocal %8 : vector<2x1xf32> -> vector<2x1xf32>
    %10 = vector.broadcast %9 : vector<2x1xf32> to vector<2x4xf32>
    %11 = arith.mulf %2, %10 : vector<2x4xf32>
    %c0_6 = arith.constant 0 : index
    %c0_7 = arith.constant 0 : index
    %c0_8 = arith.constant 0 : index
    %c0_9 = arith.constant 0 : index
    %12 = vector.load %arg1[%c0_6, %c0_7, %c0_8, %c0_9] : memref<2x16x16x4xf32, #tpu.memory_space<vmem>>, vector<2x16x16x4xf32>
    %cst_10 = arith.constant dense<0xFF800000> : vector<2x16x4xf32>
    %13 = vector.multi_reduction <maximumf>, %12, %cst_10 [1] : vector<2x16x16x4xf32> to vector<2x16x4xf32>
    %cst_11 = arith.constant dense<0xFF800000> : vector<2x4xf32>
    %14 = vector.multi_reduction <maximumf>, %13, %cst_11 [1] : vector<2x16x4xf32> to vector<2x4xf32>
    %15 = arith.mulf %14, %14 : vector<2x4xf32>
    %cst_12 = arith.constant dense<0.000000e+00> : vector<2xf32>
    %16 = vector.multi_reduction <add>, %15, %cst_12 [1] : vector<2x4xf32> to vector<2xf32>
    %17 = vector.shape_cast %16 : vector<2xf32> to vector<2x1xf32>
    %18 = math.sqrt %17 : vector<2x1xf32>
    %cst_13 = arith.constant 9.99999997E-7 : f32
    %19 = vector.broadcast %cst_13 : f32 to vector<2x1xf32>
    %20 = arith.addf %18, %19 : vector<2x1xf32>
    %21 = tpu.reciprocal %20 : vector<2x1xf32> -> vector<2x1xf32>
    %22 = vector.broadcast %21 : vector<2x1xf32> to vector<2x4xf32>
    %23 = arith.mulf %14, %22 : vector<2x4xf32>
    %24 = arith.addf %11, %23 : vector<2x4xf32>
    %c0_14 = arith.constant 0 : index
    %c0_15 = arith.constant 0 : index
    %c0_16 = arith.constant 0 : index
    %c0_17 = arith.constant 0 : index
    %25 = vector.load %arg1[%c0_14, %c0_15, %c0_16, %c0_17] : memref<2x16x16x4xf32, #tpu.memory_space<vmem>>, vector<2x10x10x4xf32>
    %cst_18 = arith.constant dense<0xFF800000> : vector<2x10x4xf32>
    %26 = vector.multi_reduction <maximumf>, %25, %cst_18 [1] : vector<2x10x10x4xf32> to vector<2x10x4xf32>
    %cst_19 = arith.constant dense<0xFF800000> : vector<2x4xf32>
    %27 = vector.multi_reduction <maximumf>, %26, %cst_19 [1] : vector<2x10x4xf32> to vector<2x4xf32>
    %28 = arith.mulf %27, %27 : vector<2x4xf32>
    %cst_20 = arith.constant dense<0.000000e+00> : vector<2xf32>
    %29 = vector.multi_reduction <add>, %28, %cst_20 [1] : vector<2x4xf32> to vector<2xf32>
    %30 = vector.shape_cast %29 : vector<2xf32> to vector<2x1xf32>
    %31 = math.sqrt %30 : vector<2x1xf32>
    %cst_21 = arith.constant 9.99999997E-7 : f32
    %32 = vector.broadcast %cst_21 : f32 to vector<2x1xf32>
    %33 = arith.addf %31, %32 : vector<2x1xf32>
    %34 = tpu.reciprocal %33 : vector<2x1xf32> -> vector<2x1xf32>
    %35 = vector.broadcast %34 : vector<2x1xf32> to vector<2x4xf32>
    %36 = arith.mulf %27, %35 : vector<2x4xf32>
    %37 = arith.addf %24, %36 : vector<2x4xf32>
    %c0_22 = arith.constant 0 : index
    %c0_23 = arith.constant 0 : index
    %c6 = arith.constant 6 : index
    %c0_24 = arith.constant 0 : index
    %38 = vector.load %arg1[%c0_22, %c0_23, %c6, %c0_24] : memref<2x16x16x4xf32, #tpu.memory_space<vmem>>, vector<2x10x10x4xf32>
    %cst_25 = arith.constant dense<0xFF800000> : vector<2x10x4xf32>
    %39 = vector.multi_reduction <maximumf>, %38, %cst_25 [1] : vector<2x10x10x4xf32> to vector<2x10x4xf32>
    %cst_26 = arith.constant dense<0xFF800000> : vector<2x4xf32>
    %40 = vector.multi_reduction <maximumf>, %39, %cst_26 [1] : vector<2x10x4xf32> to vector<2x4xf32>
    %41 = arith.mulf %40, %40 : vector<2x4xf32>
    %cst_27 = arith.constant dense<0.000000e+00> : vector<2xf32>
    %42 = vector.multi_reduction <add>, %41, %cst_27 [1] : vector<2x4xf32> to vector<2xf32>
    %43 = vector.shape_cast %42 : vector<2xf32> to vector<2x1xf32>
    %44 = math.sqrt %43 : vector<2x1xf32>
    %cst_28 = arith.constant 9.99999997E-7 : f32
    %45 = vector.broadcast %cst_28 : f32 to vector<2x1xf32>
    %46 = arith.addf %44, %45 : vector<2x1xf32>
    %47 = tpu.reciprocal %46 : vector<2x1xf32> -> vector<2x1xf32>
    %48 = vector.broadcast %47 : vector<2x1xf32> to vector<2x4xf32>
    %49 = arith.mulf %40, %48 : vector<2x4xf32>
    %50 = arith.addf %37, %49 : vector<2x4xf32>
    %c0_29 = arith.constant 0 : index
    %c6_30 = arith.constant 6 : index
    %c0_31 = arith.constant 0 : index
    %c0_32 = arith.constant 0 : index
    %51 = vector.load %arg1[%c0_29, %c6_30, %c0_31, %c0_32] : memref<2x16x16x4xf32, #tpu.memory_space<vmem>>, vector<2x10x10x4xf32>
    %cst_33 = arith.constant dense<0xFF800000> : vector<2x10x4xf32>
    %52 = vector.multi_reduction <maximumf>, %51, %cst_33 [1] : vector<2x10x10x4xf32> to vector<2x10x4xf32>
    %cst_34 = arith.constant dense<0xFF800000> : vector<2x4xf32>
    %53 = vector.multi_reduction <maximumf>, %52, %cst_34 [1] : vector<2x10x4xf32> to vector<2x4xf32>
    %54 = arith.mulf %53, %53 : vector<2x4xf32>
    %cst_35 = arith.constant dense<0.000000e+00> : vector<2xf32>
    %55 = vector.multi_reduction <add>, %54, %cst_35 [1] : vector<2x4xf32> to vector<2xf32>
    %56 = vector.shape_cast %55 : vector<2xf32> to vector<2x1xf32>
    %57 = math.sqrt %56 : vector<2x1xf32>
    %cst_36 = arith.constant 9.99999997E-7 : f32
    %58 = vector.broadcast %cst_36 : f32 to vector<2x1xf32>
    %59 = arith.addf %57, %58 : vector<2x1xf32>
    %60 = tpu.reciprocal %59 : vector<2x1xf32> -> vector<2x1xf32>
    %61 = vector.broadcast %60 : vector<2x1xf32> to vector<2x4xf32>
    %62 = arith.mulf %53, %61 : vector<2x4xf32>
    %63 = arith.addf %50, %62 : vector<2x4xf32>
    %c0_37 = arith.constant 0 : index
    %c6_38 = arith.constant 6 : index
    %c6_39 = arith.constant 6 : index
    %c0_40 = arith.constant 0 : index
    %64 = vector.load %arg1[%c0_37, %c6_38, %c6_39, %c0_40] : memref<2x16x16x4xf32, #tpu.memory_space<vmem>>, vector<2x10x10x4xf32>
    %cst_41 = arith.constant dense<0xFF800000> : vector<2x10x4xf32>
    %65 = vector.multi_reduction <maximumf>, %64, %cst_41 [1] : vector<2x10x10x4xf32> to vector<2x10x4xf32>
    %cst_42 = arith.constant dense<0xFF800000> : vector<2x4xf32>
    %66 = vector.multi_reduction <maximumf>, %65, %cst_42 [1] : vector<2x10x4xf32> to vector<2x4xf32>
    %67 = arith.mulf %66, %66 : vector<2x4xf32>
    %cst_43 = arith.constant dense<0.000000e+00> : vector<2xf32>
    %68 = vector.multi_reduction <add>, %67, %cst_43 [1] : vector<2x4xf32> to vector<2xf32>
    %69 = vector.shape_cast %68 : vector<2xf32> to vector<2x1xf32>
    %70 = math.sqrt %69 : vector<2x1xf32>
    %cst_44 = arith.constant 9.99999997E-7 : f32
    %71 = vector.broadcast %cst_44 : f32 to vector<2x1xf32>
    %72 = arith.addf %70, %71 : vector<2x1xf32>
    %73 = tpu.reciprocal %72 : vector<2x1xf32> -> vector<2x1xf32>
    %74 = vector.broadcast %73 : vector<2x1xf32> to vector<2x4xf32>
    %75 = arith.mulf %66, %74 : vector<2x4xf32>
    %76 = arith.addf %63, %75 : vector<2x4xf32>
    %c0_45 = arith.constant 0 : index
    %c0_46 = arith.constant 0 : index
    %c0_47 = arith.constant 0 : index
    %c0_48 = arith.constant 0 : index
    %77 = vector.load %arg1[%c0_45, %c0_46, %c0_47, %c0_48] : memref<2x16x16x4xf32, #tpu.memory_space<vmem>>, vector<2x8x8x4xf32>
    %cst_49 = arith.constant dense<0xFF800000> : vector<2x8x4xf32>
    %78 = vector.multi_reduction <maximumf>, %77, %cst_49 [1] : vector<2x8x8x4xf32> to vector<2x8x4xf32>
    %cst_50 = arith.constant dense<0xFF800000> : vector<2x4xf32>
    %79 = vector.multi_reduction <maximumf>, %78, %cst_50 [1] : vector<2x8x4xf32> to vector<2x4xf32>
    %80 = arith.mulf %79, %79 : vector<2x4xf32>
    %cst_51 = arith.constant dense<0.000000e+00> : vector<2xf32>
    %81 = vector.multi_reduction <add>, %80, %cst_51 [1] : vector<2x4xf32> to vector<2xf32>
    %82 = vector.shape_cast %81 : vector<2xf32> to vector<2x1xf32>
    %83 = math.sqrt %82 : vector<2x1xf32>
    %cst_52 = arith.constant 9.99999997E-7 : f32
    %84 = vector.broadcast %cst_52 : f32 to vector<2x1xf32>
    %85 = arith.addf %83, %84 : vector<2x1xf32>
    %86 = tpu.reciprocal %85 : vector<2x1xf32> -> vector<2x1xf32>
    %87 = vector.broadcast %86 : vector<2x1xf32> to vector<2x4xf32>
    %88 = arith.mulf %79, %87 : vector<2x4xf32>
    %89 = arith.addf %76, %88 : vector<2x4xf32>
    %c0_53 = arith.constant 0 : index
    %c0_54 = arith.constant 0 : index
    %c4 = arith.constant 4 : index
    %c0_55 = arith.constant 0 : index
    %90 = vector.load %arg1[%c0_53, %c0_54, %c4, %c0_55] : memref<2x16x16x4xf32, #tpu.memory_space<vmem>>, vector<2x8x8x4xf32>
    %cst_56 = arith.constant dense<0xFF800000> : vector<2x8x4xf32>
    %91 = vector.multi_reduction <maximumf>, %90, %cst_56 [1] : vector<2x8x8x4xf32> to vector<2x8x4xf32>
    %cst_57 = arith.constant dense<0xFF800000> : vector<2x4xf32>
    %92 = vector.multi_reduction <maximumf>, %91, %cst_57 [1] : vector<2x8x4xf32> to vector<2x4xf32>
    %93 = arith.mulf %92, %92 : vector<2x4xf32>
    %cst_58 = arith.constant dense<0.000000e+00> : vector<2xf32>
    %94 = vector.multi_reduction <add>, %93, %cst_58 [1] : vector<2x4xf32> to vector<2xf32>
    %95 = vector.shape_cast %94 : vector<2xf32> to vector<2x1xf32>
    %96 = math.sqrt %95 : vector<2x1xf32>
    %cst_59 = arith.constant 9.99999997E-7 : f32
    %97 = vector.broadcast %cst_59 : f32 to vector<2x1xf32>
    %98 = arith.addf %96, %97 : vector<2x1xf32>
    %99 = tpu.reciprocal %98 : vector<2x1xf32> -> vector<2x1xf32>
    %100 = vector.broadcast %99 : vector<2x1xf32> to vector<2x4xf32>
    %101 = arith.mulf %92, %100 : vector<2x4xf32>
    %102 = arith.addf %89, %101 : vector<2x4xf32>
    %c0_60 = arith.constant 0 : index
    %c0_61 = arith.constant 0 : index
    %c8 = arith.constant 8 : index
    %c0_62 = arith.constant 0 : index
    %103 = vector.load %arg1[%c0_60, %c0_61, %c8, %c0_62] : memref<2x16x16x4xf32, #tpu.memory_space<vmem>>, vector<2x8x8x4xf32>
    %cst_63 = arith.constant dense<0xFF800000> : vector<2x8x4xf32>
    %104 = vector.multi_reduction <maximumf>, %103, %cst_63 [1] : vector<2x8x8x4xf32> to vector<2x8x4xf32>
    %cst_64 = arith.constant dense<0xFF800000> : vector<2x4xf32>
    %105 = vector.multi_reduction <maximumf>, %104, %cst_64 [1] : vector<2x8x4xf32> to vector<2x4xf32>
    %106 = arith.mulf %105, %105 : vector<2x4xf32>
    %cst_65 = arith.constant dense<0.000000e+00> : vector<2xf32>
    %107 = vector.multi_reduction <add>, %106, %cst_65 [1] : vector<2x4xf32> to vector<2xf32>
    %108 = vector.shape_cast %107 : vector<2xf32> to vector<2x1xf32>
    %109 = math.sqrt %108 : vector<2x1xf32>
    %cst_66 = arith.constant 9.99999997E-7 : f32
    %110 = vector.broadcast %cst_66 : f32 to vector<2x1xf32>
    %111 = arith.addf %109, %110 : vector<2x1xf32>
    %112 = tpu.reciprocal %111 : vector<2x1xf32> -> vector<2x1xf32>
    %113 = vector.broadcast %112 : vector<2x1xf32> to vector<2x4xf32>
    %114 = arith.mulf %105, %113 : vector<2x4xf32>
    %115 = arith.addf %102, %114 : vector<2x4xf32>
    %c0_67 = arith.constant 0 : index
    %c4_68 = arith.constant 4 : index
    %c0_69 = arith.constant 0 : index
    %c0_70 = arith.constant 0 : index
    %116 = vector.load %arg1[%c0_67, %c4_68, %c0_69, %c0_70] : memref<2x16x16x4xf32, #tpu.memory_space<vmem>>, vector<2x8x8x4xf32>
    %cst_71 = arith.constant dense<0xFF800000> : vector<2x8x4xf32>
    %117 = vector.multi_reduction <maximumf>, %116, %cst_71 [1] : vector<2x8x8x4xf32> to vector<2x8x4xf32>
    %cst_72 = arith.constant dense<0xFF800000> : vector<2x4xf32>
    %118 = vector.multi_reduction <maximumf>, %117, %cst_72 [1] : vector<2x8x4xf32> to vector<2x4xf32>
    %119 = arith.mulf %118, %118 : vector<2x4xf32>
    %cst_73 = arith.constant dense<0.000000e+00> : vector<2xf32>
    %120 = vector.multi_reduction <add>, %119, %cst_73 [1] : vector<2x4xf32> to vector<2xf32>
    %121 = vector.shape_cast %120 : vector<2xf32> to vector<2x1xf32>
    %122 = math.sqrt %121 : vector<2x1xf32>
    %cst_74 = arith.constant 9.99999997E-7 : f32
    %123 = vector.broadcast %cst_74 : f32 to vector<2x1xf32>
    %124 = arith.addf %122, %123 : vector<2x1xf32>
    %125 = tpu.reciprocal %124 : vector<2x1xf32> -> vector<2x1xf32>
    %126 = vector.broadcast %125 : vector<2x1xf32> to vector<2x4xf32>
    %127 = arith.mulf %118, %126 : vector<2x4xf32>
    %128 = arith.addf %115, %127 : vector<2x4xf32>
    %c0_75 = arith.constant 0 : index
    %c4_76 = arith.constant 4 : index
    %c4_77 = arith.constant 4 : index
    %c0_78 = arith.constant 0 : index
    %129 = vector.load %arg1[%c0_75, %c4_76, %c4_77, %c0_78] : memref<2x16x16x4xf32, #tpu.memory_space<vmem>>, vector<2x8x8x4xf32>
    %cst_79 = arith.constant dense<0xFF800000> : vector<2x8x4xf32>
    %130 = vector.multi_reduction <maximumf>, %129, %cst_79 [1] : vector<2x8x8x4xf32> to vector<2x8x4xf32>
    %cst_80 = arith.constant dense<0xFF800000> : vector<2x4xf32>
    %131 = vector.multi_reduction <maximumf>, %130, %cst_80 [1] : vector<2x8x4xf32> to vector<2x4xf32>
    %132 = arith.mulf %131, %131 : vector<2x4xf32>
    %cst_81 = arith.constant dense<0.000000e+00> : vector<2xf32>
    %133 = vector.multi_reduction <add>, %132, %cst_81 [1] : vector<2x4xf32> to vector<2xf32>
    %134 = vector.shape_cast %133 : vector<2xf32> to vector<2x1xf32>
    %135 = math.sqrt %134 : vector<2x1xf32>
    %cst_82 = arith.constant 9.99999997E-7 : f32
    %136 = vector.broadcast %cst_82 : f32 to vector<2x1xf32>
    %137 = arith.addf %135, %136 : vector<2x1xf32>
    %138 = tpu.reciprocal %137 : vector<2x1xf32> -> vector<2x1xf32>
    %139 = vector.broadcast %138 : vector<2x1xf32> to vector<2x4xf32>
    %140 = arith.mulf %131, %139 : vector<2x4xf32>
    %141 = arith.addf %128, %140 : vector<2x4xf32>
    %c0_83 = arith.constant 0 : index
    %c4_84 = arith.constant 4 : index
    %c8_85 = arith.constant 8 : index
    %c0_86 = arith.constant 0 : index
    %142 = vector.load %arg1[%c0_83, %c4_84, %c8_85, %c0_86] : memref<2x16x16x4xf32, #tpu.memory_space<vmem>>, vector<2x8x8x4xf32>
    %cst_87 = arith.constant dense<0xFF800000> : vector<2x8x4xf32>
    %143 = vector.multi_reduction <maximumf>, %142, %cst_87 [1] : vector<2x8x8x4xf32> to vector<2x8x4xf32>
    %cst_88 = arith.constant dense<0xFF800000> : vector<2x4xf32>
    %144 = vector.multi_reduction <maximumf>, %143, %cst_88 [1] : vector<2x8x4xf32> to vector<2x4xf32>
    %145 = arith.mulf %144, %144 : vector<2x4xf32>
    %cst_89 = arith.constant dense<0.000000e+00> : vector<2xf32>
    %146 = vector.multi_reduction <add>, %145, %cst_89 [1] : vector<2x4xf32> to vector<2xf32>
    %147 = vector.shape_cast %146 : vector<2xf32> to vector<2x1xf32>
    %148 = math.sqrt %147 : vector<2x1xf32>
    %cst_90 = arith.constant 9.99999997E-7 : f32
    %149 = vector.broadcast %cst_90 : f32 to vector<2x1xf32>
    %150 = arith.addf %148, %149 : vector<2x1xf32>
    %151 = tpu.reciprocal %150 : vector<2x1xf32> -> vector<2x1xf32>
    %152 = vector.broadcast %151 : vector<2x1xf32> to vector<2x4xf32>
    %153 = arith.mulf %144, %152 : vector<2x4xf32>
    %154 = arith.addf %141, %153 : vector<2x4xf32>
    %c0_91 = arith.constant 0 : index
    %c8_92 = arith.constant 8 : index
    %c0_93 = arith.constant 0 : index
    %c0_94 = arith.constant 0 : index
    %155 = vector.load %arg1[%c0_91, %c8_92, %c0_93, %c0_94] : memref<2x16x16x4xf32, #tpu.memory_space<vmem>>, vector<2x8x8x4xf32>
    %cst_95 = arith.constant dense<0xFF800000> : vector<2x8x4xf32>
    %156 = vector.multi_reduction <maximumf>, %155, %cst_95 [1] : vector<2x8x8x4xf32> to vector<2x8x4xf32>
    %cst_96 = arith.constant dense<0xFF800000> : vector<2x4xf32>
    %157 = vector.multi_reduction <maximumf>, %156, %cst_96 [1] : vector<2x8x4xf32> to vector<2x4xf32>
    %158 = arith.mulf %157, %157 : vector<2x4xf32>
    %cst_97 = arith.constant dense<0.000000e+00> : vector<2xf32>
    %159 = vector.multi_reduction <add>, %158, %cst_97 [1] : vector<2x4xf32> to vector<2xf32>
    %160 = vector.shape_cast %159 : vector<2xf32> to vector<2x1xf32>
    %161 = math.sqrt %160 : vector<2x1xf32>
    %cst_98 = arith.constant 9.99999997E-7 : f32
    %162 = vector.broadcast %cst_98 : f32 to vector<2x1xf32>
    %163 = arith.addf %161, %162 : vector<2x1xf32>
    %164 = tpu.reciprocal %163 : vector<2x1xf32> -> vector<2x1xf32>
    %165 = vector.broadcast %164 : vector<2x1xf32> to vector<2x4xf32>
    %166 = arith.mulf %157, %165 : vector<2x4xf32>
    %167 = arith.addf %154, %166 : vector<2x4xf32>
    %c0_99 = arith.constant 0 : index
    %c8_100 = arith.constant 8 : index
    %c4_101 = arith.constant 4 : index
    %c0_102 = arith.constant 0 : index
    %168 = vector.load %arg1[%c0_99, %c8_100, %c4_101, %c0_102] : memref<2x16x16x4xf32, #tpu.memory_space<vmem>>, vector<2x8x8x4xf32>
    %cst_103 = arith.constant dense<0xFF800000> : vector<2x8x4xf32>
    %169 = vector.multi_reduction <maximumf>, %168, %cst_103 [1] : vector<2x8x8x4xf32> to vector<2x8x4xf32>
    %cst_104 = arith.constant dense<0xFF800000> : vector<2x4xf32>
    %170 = vector.multi_reduction <maximumf>, %169, %cst_104 [1] : vector<2x8x4xf32> to vector<2x4xf32>
    %171 = arith.mulf %170, %170 : vector<2x4xf32>
    %cst_105 = arith.constant dense<0.000000e+00> : vector<2xf32>
    %172 = vector.multi_reduction <add>, %171, %cst_105 [1] : vector<2x4xf32> to vector<2xf32>
    %173 = vector.shape_cast %172 : vector<2xf32> to vector<2x1xf32>
    %174 = math.sqrt %173 : vector<2x1xf32>
    %cst_106 = arith.constant 9.99999997E-7 : f32
    %175 = vector.broadcast %cst_106 : f32 to vector<2x1xf32>
    %176 = arith.addf %174, %175 : vector<2x1xf32>
    %177 = tpu.reciprocal %176 : vector<2x1xf32> -> vector<2x1xf32>
    %178 = vector.broadcast %177 : vector<2x1xf32> to vector<2x4xf32>
    %179 = arith.mulf %170, %178 : vector<2x4xf32>
    %180 = arith.addf %167, %179 : vector<2x4xf32>
    %c0_107 = arith.constant 0 : index
    %c8_108 = arith.constant 8 : index
    %c8_109 = arith.constant 8 : index
    %c0_110 = arith.constant 0 : index
    %181 = vector.load %arg1[%c0_107, %c8_108, %c8_109, %c0_110] : memref<2x16x16x4xf32, #tpu.memory_space<vmem>>, vector<2x8x8x4xf32>
    %cst_111 = arith.constant dense<0xFF800000> : vector<2x8x4xf32>
    %182 = vector.multi_reduction <maximumf>, %181, %cst_111 [1] : vector<2x8x8x4xf32> to vector<2x8x4xf32>
    %cst_112 = arith.constant dense<0xFF800000> : vector<2x4xf32>
    %183 = vector.multi_reduction <maximumf>, %182, %cst_112 [1] : vector<2x8x4xf32> to vector<2x4xf32>
    %184 = arith.mulf %183, %183 : vector<2x4xf32>
    %cst_113 = arith.constant dense<0.000000e+00> : vector<2xf32>
    %185 = vector.multi_reduction <add>, %184, %cst_113 [1] : vector<2x4xf32> to vector<2xf32>
    %186 = vector.shape_cast %185 : vector<2xf32> to vector<2x1xf32>
    %187 = math.sqrt %186 : vector<2x1xf32>
    %cst_114 = arith.constant 9.99999997E-7 : f32
    %188 = vector.broadcast %cst_114 : f32 to vector<2x1xf32>
    %189 = arith.addf %187, %188 : vector<2x1xf32>
    %190 = tpu.reciprocal %189 : vector<2x1xf32> -> vector<2x1xf32>
    %191 = vector.broadcast %190 : vector<2x1xf32> to vector<2x4xf32>
    %192 = arith.mulf %183, %191 : vector<2x4xf32>
    %193 = arith.addf %180, %192 : vector<2x4xf32>
    %c0_115 = arith.constant 0 : index
    %c0_116 = arith.constant 0 : index
    %194 = vector.load %arg2[%c0_115, %c0_116] : memref<2x4xf32, #tpu.memory_space<vmem>>, vector<2x4xf32>
    tpu.vector_store %arg2[%c0_115, %c0_116], %193 {strides = array<i32>} : memref<2x4xf32, #tpu.memory_space<vmem>>, vector<2x4xf32>,
    return
  }
  func.func @transform_0(%arg0: i32) -> (i32, i32, i32, i32) {
    %c0_i32 = arith.constant 0 : i32
    %c0_i32_0 = arith.constant 0 : i32
    %c0_i32_1 = arith.constant 0 : i32
    %c0_i32_2 = arith.constant 0 : i32
    return %arg0, %c0_i32, %c0_i32_0, %c0_i32_1 : i32, i32, i32, i32
  }
  func.func @transform_1(%arg0: i32) -> (i32, i32) {
    %c0_i32 = arith.constant 0 : i32
    %c0_i32_0 = arith.constant 0 : i32
    return %arg0, %c0_i32 : i32, i32
  }
}

</mosaic_0001>

<llo_original>
// kernel: rmac_nhwc.1
$region0: #{rmac_nhwc.1}
  #allocation0 [shape = 'u32[]', space=smem, size = 0x4, offset = 0x4, fixed_abs, tag = 'smem constant byte address 0x4 - core index']
  #allocation1 [shape = 'u32[144,128]{1,0:T(1,128)}', space=vmem, size = 0x12000, scoped, tag = 'internal scratch']
  %s0 = inlined_call_operand.vmem [shape: f32[2,16,16,4], index: 0, kind: input, shape index: {}]
  %s1 = inlined_call_operand.hbm [shape: f32[2,4], index: 1, kind: output, shape index: {}]
  %s2 = sld [smem:[#allocation0]]
  $region14: #{rmac_nhwc.1} parent=0
    _
  %s4 = ssub.s32 1, %s2
  %s5 = scalar_select 0, %s4, %s2
  $region1: #{rmac_nhwc.1} parent=0
    #allocation2 [shape = 'u8[1024]{0}', space=vmem, size = 0x400, scoped, tag = 'output window, operand 0, single buffered']
    #allocation3 [shape = 's32[1]{0}', space=sflag, size = 0x4, scoped, tag = 'scoped memory for rmac_nhwc.1']
    %6 = vsyncpa [#allocation3], 0
    // Predicated region
    $region2: #{rmac_nhwc.1} parent=1 // pred_check
      _
    $region3: #{rmac_nhwc.1} parent=1 // pred_check_branch
      %8 = sbr.rel (0) target = $region5
    $region4: #{rmac_nhwc.1} parent=1 // pred_region
      _
    $region5: #{rmac_nhwc.1} parent=1 // pred_fallthru
      _
    %v9 = vld [vmem:[%s0] sm:$0xff]
    %v10 = vld [vmem:[%s0 + $0x8] sm:$0xff]
    %v11 = vld [vmem:[%s0 + $0x10] sm:$0xff]
    %v12 = vld [vmem:[%s0 + $0x18] sm:$0xff]
    %v13 = vld [vmem:[%s0 + $0x20] sm:$0xff]
    %v14 = vld [vmem:[%s0 + $0x28] sm:$0xff]
    %v15 = vld [vmem:[%s0 + $0x30] sm:$0xff]
    %v16 = vld [vmem:[%s0 + $0x38] sm:$0xff]
    %v17 = vld [vmem:[%s0 + $0x40] sm:$0xff]
    %v18 = vld [vmem:[%s0 + $0x48] sm:$0xff]
    %v19 = vld [vmem:[%s0 + $0x50] sm:$0xff]
    %v20 = vld [vmem:[%s0 + $0x58] sm:$0xff]
    %v21 = vld [vmem:[%s0 + $0x60] sm:$0xff]
    %v22 = vld [vmem:[%s0 + $0x68] sm:$0xff]
    %v23 = vld [vmem:[%s0 + $0x70] sm:$0xff]
    %v24 = vld [vmem:[%s0 + $0x78] sm:$0xff]
    %v25 = vld [vmem:[%s0 + $0x80] sm:$0xff]
    %v26 = vld [vmem:[%s0 + $0x88] sm:$0xff]
    %v27 = vld [vmem:[%s0 + $0x90] sm:$0xff]
    %v28 = vld [vmem:[%s0 + $0x98] sm:$0xff]
    %v29 = vld [vmem:[%s0 + $0xa0] sm:$0xff]
    %v30 = vld [vmem:[%s0 + $0xa8] sm:$0xff]
    %v31 = vld [vmem:[%s0 + $0xb0] sm:$0xff]
    %v32 = vld [vmem:[%s0 + $0xb8] sm:$0xff]
    %v33 = vld [vmem:[%s0 + $0xc0] sm:$0xff]
    %v34 = vld [vmem:[%s0 + $0xc8] sm:$0xff]
    %v35 = vld [vmem:[%s0 + $0xd0] sm:$0xff]
    %v36 = vld [vmem:[%s0 + $0xd8] sm:$0xff]
    %v37 = vld [vmem:[%s0 + $0xe0] sm:$0xff]
    %v38 = vld [vmem:[%s0 + $0xe8] sm:$0xff]
    %v39 = vld [vmem:[%s0 + $0xf0] sm:$0xff]
    %v40 = vld [vmem:[%s0 + $0xf8] sm:$0xff]
    %v41 = vld [vmem:[%s0 + $0x100] sm:$0xff]
    %v42 = vld [vmem:[%s0 + $0x108] sm:$0xff]
    %v43 = vld [vmem:[%s0 + $0x110] sm:$0xff]
    %v44 = vld [vmem:[%s0 + $0x118] sm:$0xff]
    %v45 = vld [vmem:[%s0 + $0x120] sm:$0xff]
    %v46 = vld [vmem:[%s0 + $0x128] sm:$0xff]
    %v47 = vld [vmem:[%s0 + $0x130] sm:$0xff]
    %v48 = vld [vmem:[%s0 + $0x138] sm:$0xff]
    %v49 = vld [vmem:[%s0 + $0x140] sm:$0xff]
    %v50 = vld [vmem:[%s0 + $0x148] sm:$0xff]
    %v51 = vld [vmem:[%s0 + $0x150] sm:$0xff]
    %v52 = vld [vmem:[%s0 + $0x158] sm:$0xff]
    %v53 = vld [vmem:[%s0 + $0x160] sm:$0xff]
    %v54 = vld [vmem:[%s0 + $0x168] sm:$0xff]
    %v55 = vld [vmem:[%s0 + $0x170] sm:$0xff]
    %v56 = vld [vmem:[%s0 + $0x178] sm:$0xff]
    %v57 = vld [vmem:[%s0 + $0x180] sm:$0xff]
    %v58 = vld [vmem:[%s0 + $0x188] sm:$0xff]
    %v59 = vld [vmem:[%s0 + $0x190] sm:$0xff]
    %v60 = vld [vmem:[%s0 + $0x198] sm:$0xff]
    %v61 = vld [vmem:[%s0 + $0x1a0] sm:$0xff]
    %v62 = vld [vmem:[%s0 + $0x1a8] sm:$0xff]
    %v63 = vld [vmem:[%s0 + $0x1b0] sm:$0xff]
    %v64 = vld [vmem:[%s0 + $0x1b8] sm:$0xff]
    %v65 = vld [vmem:[%s0 + $0x1c0] sm:$0xff]
    %v66 = vld [vmem:[%s0 + $0x1c8] sm:$0xff]
    %v67 = vld [vmem:[%s0 + $0x1d0] sm:$0xff]
    %v68 = vld [vmem:[%s0 + $0x1d8] sm:$0xff]
    %v69 = vld [vmem:[%s0 + $0x1e0] sm:$0xff]
    %v70 = vld [vmem:[%s0 + $0x1e8] sm:$0xff]
    %v71 = vld [vmem:[%s0 + $0x1f0] sm:$0xff]
    %v72 = vld [vmem:[%s0 + $0x1f8] sm:$0xff]
    %vm73 = vcmask 31744
    %v74 = vsel %vm73, %v9, -inf
    %v75 = vsel %vm73, %v11, -inf
    %v76 = vmax.f32 %v74, %v75
    %v77 = vsel %vm73, %v13, -inf
    %v78 = vmax.f32 %v76, %v77
    %v79 = vsel %vm73, %v15, -inf
    %v80 = vmax.f32 %v78, %v79
    %v81 = vsel %vm73, %v17, -inf
    %v82 = vmax.f32 %v80, %v81
    %v83 = vsel %vm73, %v19, -inf
    %v84 = vmax.f32 %v82, %v83
    %v85 = vsel %vm73, %v21, -inf
    %v86 = vmax.f32 %v84, %v85
    %v87 = vsel %vm73, %v23, -inf
    %v88 = vmax.f32 %v86, %v87
    %v89 = vsel %vm73, %v25, -inf
    %v90 = vmax.f32 %v88, %v89
    %v91 = vsel %vm73, %v27, -inf
    %v92 = vmax.f32 %v90, %v91
    %v93 = vsel %vm73, %v29, -inf
    %v94 = vmax.f32 %v92, %v93
    %v95 = vsel %vm73, %v31, -inf
    %v96 = vmax.f32 %v94, %v95
    %v97 = vsel %vm73, %v33, -inf
    %v98 = vmax.f32 %v96, %v97
    %v99 = vsel %vm73, %v35, -inf
    %v100 = vmax.f32 %v98, %v99
    %v101 = vsel %vm73, %v37, -inf
    %v102 = vmax.f32 %v100, %v101
    %v103 = vsel %vm73, %v39, -inf
    %v104 = vmax.f32 %v102, %v103
    %v105 = vsel %vm73, %v10, -inf
    %v106 = vsel %vm73, %v12, -inf
    %v107 = vmax.f32 %v105, %v106
    %v108 = vsel %vm73, %v14, -inf
    %v109 = vmax.f32 %v107, %v108
    %v110 = vsel %vm73, %v16, -inf
    %v111 = vmax.f32 %v109, %v110
    %v112 = vsel %vm73, %v18, -inf
    %v113 = vmax.f32 %v111, %v112
    %v114 = vsel %vm73, %v20, -inf
    %v115 = vmax.f32 %v113, %v114
    %v116 = vsel %vm73, %v22, -inf
    %v117 = vmax.f32 %v115, %v116
    %v118 = vsel %vm73, %v24, -inf
    %v119 = vmax.f32 %v117, %v118
    %v120 = vsel %vm73, %v26, -inf
    %v121 = vmax.f32 %v119, %v120
    %v122 = vsel %vm73, %v28, -inf
    %v123 = vmax.f32 %v121, %v122
    %v124 = vsel %vm73, %v30, -inf
    %v125 = vmax.f32 %v123, %v124
    %v126 = vsel %vm73, %v32, -inf
    %v127 = vmax.f32 %v125, %v126
    %v128 = vsel %vm73, %v34, -inf
    %v129 = vmax.f32 %v127, %v128
    %v130 = vsel %vm73, %v36, -inf
    %v131 = vmax.f32 %v129, %v130
    %v132 = vsel %vm73, %v38, -inf
    %v133 = vmax.f32 %v131, %v132
    %v134 = vsel %vm73, %v40, -inf
    %v135 = vmax.f32 %v133, %v134
    %v136 = vsel %vm73, %v41, -inf
    %v137 = vsel %vm73, %v43, -inf
    %v138 = vmax.f32 %v136, %v137
    %v139 = vsel %vm73, %v45, -inf
    %v140 = vmax.f32 %v138, %v139
    %v141 = vsel %vm73, %v47, -inf
    %v142 = vmax.f32 %v140, %v141
    %v143 = vsel %vm73, %v49, -inf
    %v144 = vmax.f32 %v142, %v143
    %v145 = vsel %vm73, %v51, -inf
    %v146 = vmax.f32 %v144, %v145
    %v147 = vsel %vm73, %v53, -inf
    %v148 = vmax.f32 %v146, %v147
    %v149 = vsel %vm73, %v55, -inf
    %v150 = vmax.f32 %v148, %v149
    %v151 = vsel %vm73, %v57, -inf
    %v152 = vmax.f32 %v150, %v151
    %v153 = vsel %vm73, %v59, -inf
    %v154 = vmax.f32 %v152, %v153
    %v155 = vsel %vm73, %v61, -inf
    %v156 = vmax.f32 %v154, %v155
    %v157 = vsel %vm73, %v63, -inf
    %v158 = vmax.f32 %v156, %v157
    %v159 = vsel %vm73, %v65, -inf
    %v160 = vmax.f32 %v158, %v159
    %v161 = vsel %vm73, %v67, -inf
    %v162 = vmax.f32 %v160, %v161
    %v163 = vsel %vm73, %v69, -inf
    %v164 = vmax.f32 %v162, %v163
    %v165 = vsel %vm73, %v71, -inf
    %v166 = vmax.f32 %v164, %v165
    %v167 = vsel %vm73, %v42, -inf
    %v168 = vsel %vm73, %v44, -inf
    %v169 = vmax.f32 %v167, %v168
    %v170 = vsel %vm73, %v46, -inf
    %v171 = vmax.f32 %v169, %v170
    %v172 = vsel %vm73, %v48, -inf
    %v173 = vmax.f32 %v171, %v172
    %v174 = vsel %vm73, %v50, -inf
    %v175 = vmax.f32 %v173, %v174
    %v176 = vsel %vm73, %v52, -inf
    %v177 = vmax.f32 %v175, %v176
    %v178 = vsel %vm73, %v54, -inf
    %v179 = vmax.f32 %v177, %v178
    %v180 = vsel %vm73, %v56, -inf
    %v181 = vmax.f32 %v179, %v180
    %v182 = vsel %vm73, %v58, -inf
    %v183 = vmax.f32 %v181, %v182
    %v184 = vsel %vm73, %v60, -inf
    %v185 = vmax.f32 %v183, %v184
    %v186 = vsel %vm73, %v62, -inf
    %v187 = vmax.f32 %v185, %v186
    %v188 = vsel %vm73, %v64, -inf
    %v189 = vmax.f32 %v187, %v188
    %v190 = vsel %vm73, %v66, -inf
    %v191 = vmax.f32 %v189, %v190
    %v192 = vsel %vm73, %v68, -inf
    %v193 = vmax.f32 %v191, %v192
    %v194 = vsel %vm73, %v70, -inf
    %v195 = vmax.f32 %v193, %v194
    %v196 = vsel %vm73, %v72, -inf
    %v197 = vmax.f32 %v195, %v196
    %v198 = vsel %vm73, %v104, -inf
    %v199 = vsel %vm73, %v135, -inf
    %v200 = vmax.f32 %v198, %v199
    %v201 = vrot.slane %v200, 4
    %v202 = vmax.f32 %v200, %v201
    %v203 = vrot.slane %v202, 2
    %v204 = vmax.f32 %v202, %v203
    %v205 = vrot.slane %v204, 1
    %v206 = vmax.f32 %v204, %v205
    %v207 = vsel %vm73, %v166, -inf
    %v208 = vsel %vm73, %v197, -inf
    %v209 = vmax.f32 %v207, %v208
    %v210 = vrot.slane %v209, 4
    %v211 = vmax.f32 %v209, %v210
    %v212 = vrot.slane %v211, 2
    %v213 = vmax.f32 %v211, %v212
    %v214 = vrot.slane %v213, 1
    %v215 = vmax.f32 %v213, %v214
    %v216 = vmul.f32 %v206, %v206
    %v217 = vmul.f32 %v215, %v215
    %vm220 = vcmask 1041409
    %v221 = vsel %vm220, %v217, %v216
    %vm223 = vcmask 25600
    %v224 = vsel %vm223, %v221, 0.0
    %225 = vadd.xlane.f32.xlu0 %v224
    %v226 = vpop.xlane.xlu0 %225
    %v227 = vrsqrt.pop %v226
    %v228 = vmul.f32 %v226, %v227
    %vm229 = vcmp.eq.f32.partialorder %v226, inf
    %v230 = vsel %vm229, %v226, %v228
    %vm231 = vcmp.eq.f32.partialorder %v226, 0.0
    %v232 = vand.u32 %v226, 2147483648
    %v233 = vsel %vm231, %v232, %v230
    %v234 = vadd.f32 %v233, 1e-06
    %v235 = vrcp.pop %v234
    %v237 = vrot.slane %v235, 1
    %v240 = vmul.f32 %v206, %v235
    %v241 = vmul.f32 %v215, %v237
    %v242 = vadd.f32 %v240, %v240
    %v243 = vadd.f32 %v241, %v241
    %v244 = vld [vmem:[%s0 + $0x8] sm:$0x3]
    %v245 = vld [vmem:[%s0 + $0x18] sm:$0x3]
    %v246 = vld [vmem:[%s0 + $0x28] sm:$0x3]
    %v247 = vld [vmem:[%s0 + $0x38] sm:$0x3]
    %v248 = vld [vmem:[%s0 + $0x48] sm:$0x3]
    %v249 = vld [vmem:[%s0 + $0x58] sm:$0x3]
    %v250 = vld [vmem:[%s0 + $0x68] sm:$0x3]
    %v251 = vld [vmem:[%s0 + $0x78] sm:$0x3]
    %v252 = vld [vmem:[%s0 + $0x88] sm:$0x3]
    %v253 = vld [vmem:[%s0 + $0x98] sm:$0x3]
    %v254 = vld [vmem:[%s0 + $0x108] sm:$0x3]
    %v255 = vld [vmem:[%s0 + $0x118] sm:$0x3]
    %v256 = vld [vmem:[%s0 + $0x128] sm:$0x3]
    %v257 = vld [vmem:[%s0 + $0x138] sm:$0x3]
    %v258 = vld [vmem:[%s0 + $0x148] sm:$0x3]
    %v259 = vld [vmem:[%s0 + $0x158] sm:$0x3]
    %v260 = vld [vmem:[%s0 + $0x168] sm:$0x3]
    %v261 = vld [vmem:[%s0 + $0x178] sm:$0x3]
    %v262 = vld [vmem:[%s0 + $0x188] sm:$0x3]
    %v263 = vld [vmem:[%s0 + $0x198] sm:$0x3]
    %v264 = vsel %vm223, %v244, -inf
    %v265 = vsel %vm223, %v245, -inf
    %v266 = vmax.f32 %v264, %v265
    %v267 = vsel %vm223, %v246, -inf
    %v268 = vmax.f32 %v266, %v267
    %v269 = vsel %vm223, %v247, -inf
    %v270 = vmax.f32 %v268, %v269
    %v271 = vsel %vm223, %v248, -inf
    %v272 = vmax.f32 %v270, %v271
    %v273 = vsel %vm223, %v249, -inf
    %v274 = vmax.f32 %v272, %v273
    %v275 = vsel %vm223, %v250, -inf
    %v276 = vmax.f32 %v274, %v275
    %v277 = vsel %vm223, %v251, -inf
    %v278 = vmax.f32 %v276, %v277
    %v279 = vsel %vm223, %v252, -inf
    %v280 = vmax.f32 %v278, %v279
    %v281 = vsel %vm223, %v253, -inf
    %v282 = vmax.f32 %v280, %v281
    %v283 = vsel %vm223, %v254, -inf
    %v284 = vsel %vm223, %v255, -inf
    %v285 = vmax.f32 %v283, %v284
    %v286 = vsel %vm223, %v256, -inf
    %v287 = vmax.f32 %v285, %v286
    %v288 = vsel %vm223, %v257, -inf
    %v289 = vmax.f32 %v287, %v288
    %v290 = vsel %vm223, %v258, -inf
    %v291 = vmax.f32 %v289, %v290
    %v292 = vsel %vm223, %v259, -inf
    %v293 = vmax.f32 %v291, %v292
    %v294 = vsel %vm223, %v260, -inf
    %v295 = vmax.f32 %v293, %v294
    %v296 = vsel %vm223, %v261, -inf
    %v297 = vmax.f32 %v295, %v296
    %v298 = vsel %vm223, %v262, -inf
    %v299 = vmax.f32 %v297, %v298
    %v300 = vsel %vm223, %v263, -inf
    %v301 = vmax.f32 %v299, %v300
    %v302 = vsel %vm73, %v92, -inf
    %v303 = vsel %vm223, %v282, -inf
    %v304 = vmax.f32 %v302, %v303
    %v305 = vrot.slane %v304, 4
    %v306 = vmax.f32 %v304, %v305
    %v307 = vrot.slane %v306, 2
    %v308 = vmax.f32 %v306, %v307
    %v309 = vrot.slane %v308, 1
    %v310 = vmax.f32 %v308, %v309
    %v311 = vsel %vm73, %v154, -inf
    %v312 = vsel %vm223, %v301, -inf
    %v313 = vmax.f32 %v311, %v312
    %v314 = vrot.slane %v313, 4
    %v315 = vmax.f32 %v313, %v314
    %v316 = vrot.slane %v315, 2
    %v317 = vmax.f32 %v315, %v316
    %v318 = vrot.slane %v317, 1
    %v319 = vmax.f32 %v317, %v318
    %v320 = vmul.f32 %v310, %v310
    %v321 = vmul.f32 %v319, %v319
    %v324 = vsel %vm220, %v321, %v320
    %v326 = vsel %vm223, %v324, 0.0
    %327 = vadd.xlane.f32.xlu0 %v326
    %v328 = vpop.xlane.xlu0 %327
    %v329 = vrsqrt.pop %v328
    %v330 = vmul.f32 %v328, %v329
    %vm331 = vcmp.eq.f32.partialorder %v328, inf
    %v332 = vsel %vm331, %v328, %v330
    %vm333 = vcmp.eq.f32.partialorder %v328, 0.0
    %v334 = vand.u32 %v328, 2147483648
    %v335 = vsel %vm333, %v334, %v332
    %v336 = vadd.f32 %v335, 1e-06
    %v337 = vrcp.pop %v336
    %v339 = vrot.slane %v337, 1
    %v342 = vmul.f32 %v310, %v337
    %v343 = vmul.f32 %v319, %v339
    %v344 = vadd.f32 %v242, %v342
    %v345 = vadd.f32 %v243, %v343
    %v346 = vld [vmem:[%s0 + $0x6] sm:$0xff]
    %v347 = vld [vmem:[%s0 + $0xe] sm:$0x3]
    %v348 = vld [vmem:[%s0 + $0x16] sm:$0xff]
    %v349 = vld [vmem:[%s0 + $0x1e] sm:$0x3]
    %v350 = vld [vmem:[%s0 + $0x26] sm:$0xff]
    %v351 = vld [vmem:[%s0 + $0x2e] sm:$0x3]
    %v352 = vld [vmem:[%s0 + $0x36] sm:$0xff]
    %v353 = vld [vmem:[%s0 + $0x3e] sm:$0x3]
    %v354 = vld [vmem:[%s0 + $0x46] sm:$0xff]
    %v355 = vld [vmem:[%s0 + $0x4e] sm:$0x3]
    %v356 = vld [vmem:[%s0 + $0x56] sm:$0xff]
    %v357 = vld [vmem:[%s0 + $0x5e] sm:$0x3]
    %v358 = vld [vmem:[%s0 + $0x66] sm:$0xff]
    %v359 = vld [vmem:[%s0 + $0x6e] sm:$0x3]
    %v360 = vld [vmem:[%s0 + $0x76] sm:$0xff]
    %v361 = vld [vmem:[%s0 + $0x7e] sm:$0x3]
    %v362 = vld [vmem:[%s0 + $0x86] sm:$0xff]
    %v363 = vld [vmem:[%s0 + $0x8e] sm:$0x3]
    %v364 = vld [vmem:[%s0 + $0x96] sm:$0xff]
    %v365 = vld [vmem:[%s0 + $0x9e] sm:$0x3]
    %v366 = vld [vmem:[%s0 + $0x106] sm:$0xff]
    %v367 = vld [vmem:[%s0 + $0x10e] sm:$0x3]
    %v368 = vld [vmem:[%s0 + $0x116] sm:$0xff]
    %v369 = vld [vmem:[%s0 + $0x11e] sm:$0x3]
    %v370 = vld [vmem:[%s0 + $0x126] sm:$0xff]
    %v371 = vld [vmem:[%s0 + $0x12e] sm:$0x3]
    %v372 = vld [vmem:[%s0 + $0x136] sm:$0xff]
    %v373 = vld [vmem:[%s0 + $0x13e] sm:$0x3]
    %v374 = vld [vmem:[%s0 + $0x146] sm:$0xff]
    %v375 = vld [vmem:[%s0 + $0x14e] sm:$0x3]
    %v376 = vld [vmem:[%s0 + $0x156] sm:$0xff]
    %v377 = vld [vmem:[%s0 + $0x15e] sm:$0x3]
    %v378 = vld [vmem:[%s0 + $0x166] sm:$0xff]
    %v379 = vld [vmem:[%s0 + $0x16e] sm:$0x3]
    %v380 = vld [vmem:[%s0 + $0x176] sm:$0xff]
    %v381 = vld [vmem:[%s0 + $0x17e] sm:$0x3]
    %v382 = vld [vmem:[%s0 + $0x186] sm:$0xff]
    %v383 = vld [vmem:[%s0 + $0x18e] sm:$0x3]
    %v384 = vld [vmem:[%s0 + $0x196] sm:$0xff]
    %v385 = vld [vmem:[%s0 + $0x19e] sm:$0x3]
    %v386 = vsel %vm73, %v346, -inf
    %v387 = vsel %vm73, %v348, -inf
    %v388 = vmax.f32 %v386, %v387
    %v389 = vsel %vm73, %v350, -inf
    %v390 = vmax.f32 %v388, %v389
    %v391 = vsel %vm73, %v352, -inf
    %v392 = vmax.f32 %v390, %v391
    %v393 = vsel %vm73, %v354, -inf
    %v394 = vmax.f32 %v392, %v393
    %v395 = vsel %vm73, %v356, -inf
    %v396 = vmax.f32 %v394, %v395
    %v397 = vsel %vm73, %v358, -inf
    %v398 = vmax.f32 %v396, %v397
    %v399 = vsel %vm73, %v360, -inf
    %v400 = vmax.f32 %v398, %v399
    %v401 = vsel %vm73, %v362, -inf
    %v402 = vmax.f32 %v400, %v401
    %v403 = vsel %vm73, %v364, -inf
    %v404 = vmax.f32 %v402, %v403
    %v405 = vsel %vm223, %v347, -inf
    %v406 = vsel %vm223, %v349, -inf
    %v407 = vmax.f32 %v405, %v406
    %v408 = vsel %vm223, %v351, -inf
    %v409 = vmax.f32 %v407, %v408
    %v410 = vsel %vm223, %v353, -inf
    %v411 = vmax.f32 %v409, %v410
    %v412 = vsel %vm223, %v355, -inf
    %v413 = vmax.f32 %v411, %v412
    %v414 = vsel %vm223, %v357, -inf
    %v415 = vmax.f32 %v413, %v414
    %v416 = vsel %vm223, %v359, -inf
    %v417 = vmax.f32 %v415, %v416
    %v418 = vsel %vm223, %v361, -inf
    %v419 = vmax.f32 %v417, %v418
    %v420 = vsel %vm223, %v363, -inf
    %v421 = vmax.f32 %v419, %v420
    %v422 = vsel %vm223, %v365, -inf
    %v423 = vmax.f32 %v421, %v422
    %v424 = vsel %vm73, %v366, -inf
    %v425 = vsel %vm73, %v368, -inf
    %v426 = vmax.f32 %v424, %v425
    %v427 = vsel %vm73, %v370, -inf
    %v428 = vmax.f32 %v426, %v427
    %v429 = vsel %vm73, %v372, -inf
    %v430 = vmax.f32 %v428, %v429
    %v431 = vsel %vm73, %v374, -inf
    %v432 = vmax.f32 %v430, %v431
    %v433 = vsel %vm73, %v376, -inf
    %v434 = vmax.f32 %v432, %v433
    %v435 = vsel %vm73, %v378, -inf
    %v436 = vmax.f32 %v434, %v435
    %v437 = vsel %vm73, %v380, -inf
    %v438 = vmax.f32 %v436, %v437
    %v439 = vsel %vm73, %v382, -inf
    %v440 = vmax.f32 %v438, %v439
    %v441 = vsel %vm73, %v384, -inf
    %v442 = vmax.f32 %v440, %v441
    %v443 = vsel %vm223, %v367, -inf
    %v444 = vsel %vm223, %v369, -inf
    %v445 = vmax.f32 %v443, %v444
    %v446 = vsel %vm223, %v371, -inf
    %v447 = vmax.f32 %v445, %v446
    %v448 = vsel %vm223, %v373, -inf
    %v449 = vmax.f32 %v447, %v448
    %v450 = vsel %vm223, %v375, -inf
    %v451 = vmax.f32 %v449, %v450
    %v452 = vsel %vm223, %v377, -inf
    %v453 = vmax.f32 %v451, %v452
    %v454 = vsel %vm223, %v379, -inf
    %v455 = vmax.f32 %v453, %v454
    %v456 = vsel %vm223, %v381, -inf
    %v457 = vmax.f32 %v455, %v456
    %v458 = vsel %vm223, %v383, -inf
    %v459 = vmax.f32 %v457, %v458
    %v460 = vsel %vm223, %v385, -inf
    %v461 = vmax.f32 %v459, %v460
    %v462 = vsel %vm73, %v404, -inf
    %v463 = vsel %vm223, %v423, -inf
    %v464 = vmax.f32 %v462, %v463
    %v465 = vrot.slane %v464, 4
    %v466 = vmax.f32 %v464, %v465
    %v467 = vrot.slane %v466, 2
    %v468 = vmax.f32 %v466, %v467
    %v469 = vrot.slane %v468, 1
    %v470 = vmax.f32 %v468, %v469
    %v471 = vsel %vm73, %v442, -inf
    %v472 = vsel %vm223, %v461, -inf
    %v473 = vmax.f32 %v471, %v472
    %v474 = vrot.slane %v473, 4
    %v475 = vmax.f32 %v473, %v474
    %v476 = vrot.slane %v475, 2
    %v477 = vmax.f32 %v475, %v476
    %v478 = vrot.slane %v477, 1
    %v479 = vmax.f32 %v477, %v478
    %v480 = vmul.f32 %v470, %v470
    %v481 = vmul.f32 %v479, %v479
    %v484 = vsel %vm220, %v481, %v480
    %v486 = vsel %vm223, %v484, 0.0
    %487 = vadd.xlane.f32.xlu0 %v486
    %v488 = vpop.xlane.xlu0 %487
    %v489 = vrsqrt.pop %v488
    %v490 = vmul.f32 %v488, %v489
    %vm491 = vcmp.eq.f32.partialorder %v488, inf
    %v492 = vsel %vm491, %v488, %v490
    %vm493 = vcmp.eq.f32.partialorder %v488, 0.0
    %v494 = vand.u32 %v488, 2147483648
    %v495 = vsel %vm493, %v494, %v492
    %v496 = vadd.f32 %v495, 1e-06
    %v497 = vrcp.pop %v496
    %v499 = vrot.slane %v497, 1
    %v502 = vmul.f32 %v470, %v497
    %v503 = vmul.f32 %v479, %v499
    %v504 = vadd.f32 %v344, %v502
    %v505 = vadd.f32 %v345, %v503
    %s506 = scalar_lea.vmem %s0, 96
    %v507 = vld [vmem:[%s506] sm:$0xff]
    %v508 = vld [vmem:[%s506 + $0x8] sm:$0x3]
    %v509 = vld [vmem:[%s506 + $0x10] sm:$0xff]
    %v510 = vld [vmem:[%s506 + $0x18] sm:$0x3]
    %v511 = vld [vmem:[%s506 + $0x20] sm:$0xff]
    %v512 = vld [vmem:[%s506 + $0x28] sm:$0x3]
    %v513 = vld [vmem:[%s506 + $0x30] sm:$0xff]
    %v514 = vld [vmem:[%s506 + $0x38] sm:$0x3]
    %v515 = vld [vmem:[%s506 + $0x40] sm:$0xff]
    %v516 = vld [vmem:[%s506 + $0x48] sm:$0x3]
    %v517 = vld [vmem:[%s506 + $0x50] sm:$0xff]
    %v518 = vld [vmem:[%s506 + $0x58] sm:$0x3]
    %v519 = vld [vmem:[%s506 + $0x60] sm:$0xff]
    %v520 = vld [vmem:[%s506 + $0x68] sm:$0x3]
    %v521 = vld [vmem:[%s506 + $0x70] sm:$0xff]
    %v522 = vld [vmem:[%s506 + $0x78] sm:$0x3]
    %v523 = vld [vmem:[%s506 + $0x80] sm:$0xff]
    %v524 = vld [vmem:[%s506 + $0x88] sm:$0x3]
    %v525 = vld [vmem:[%s506 + $0x90] sm:$0xff]
    %v526 = vld [vmem:[%s506 + $0x98] sm:$0x3]
    %v527 = vld [vmem:[%s506 + $0x100] sm:$0xff]
    %v528 = vld [vmem:[%s506 + $0x108] sm:$0x3]
    %v529 = vld [vmem:[%s506 + $0x110] sm:$0xff]
    %v530 = vld [vmem:[%s506 + $0x118] sm:$0x3]
    %v531 = vld [vmem:[%s506 + $0x120] sm:$0xff]
    %v532 = vld [vmem:[%s506 + $0x128] sm:$0x3]
    %v533 = vld [vmem:[%s506 + $0x130] sm:$0xff]
    %v534 = vld [vmem:[%s506 + $0x138] sm:$0x3]
    %v535 = vld [vmem:[%s506 + $0x140] sm:$0xff]
    %v536 = vld [vmem:[%s506 + $0x148] sm:$0x3]
    %v537 = vld [vmem:[%s506 + $0x150] sm:$0xff]
    %v538 = vld [vmem:[%s506 + $0x158] sm:$0x3]
    %v539 = vld [vmem:[%s506 + $0x160] sm:$0xff]
    %v540 = vld [vmem:[%s506 + $0x168] sm:$0x3]
    %v541 = vld [vmem:[%s506 + $0x170] sm:$0xff]
    %v542 = vld [vmem:[%s506 + $0x178] sm:$0x3]
    %v543 = vld [vmem:[%s506 + $0x180] sm:$0xff]
    %v544 = vld [vmem:[%s506 + $0x188] sm:$0x3]
    %v545 = vld [vmem:[%s506 + $0x190] sm:$0xff]
    %v546 = vld [vmem:[%s506 + $0x198] sm:$0x3]
    %v547 = vsel %vm73, %v507, -inf
    %v548 = vsel %vm73, %v509, -inf
    %v549 = vmax.f32 %v547, %v548
    %v550 = vsel %vm73, %v511, -inf
    %v551 = vmax.f32 %v549, %v550
    %v552 = vsel %vm73, %v513, -inf
    %v553 = vmax.f32 %v551, %v552
    %v554 = vsel %vm73, %v515, -inf
    %v555 = vmax.f32 %v553, %v554
    %v556 = vsel %vm73, %v517, -inf
    %v557 = vmax.f32 %v555, %v556
    %v558 = vsel %vm73, %v519, -inf
    %v559 = vmax.f32 %v557, %v558
    %v560 = vsel %vm73, %v521, -inf
    %v561 = vmax.f32 %v559, %v560
    %v562 = vsel %vm73, %v523, -inf
    %v563 = vmax.f32 %v561, %v562
    %v564 = vsel %vm73, %v525, -inf
    %v565 = vmax.f32 %v563, %v564
    %v566 = vsel %vm223, %v508, -inf
    %v567 = vsel %vm223, %v510, -inf
    %v568 = vmax.f32 %v566, %v567
    %v569 = vsel %vm223, %v512, -inf
    %v570 = vmax.f32 %v568, %v569
    %v571 = vsel %vm223, %v514, -inf
    %v572 = vmax.f32 %v570, %v571
    %v573 = vsel %vm223, %v516, -inf
    %v574 = vmax.f32 %v572, %v573
    %v575 = vsel %vm223, %v518, -inf
    %v576 = vmax.f32 %v574, %v575
    %v577 = vsel %vm223, %v520, -inf
    %v578 = vmax.f32 %v576, %v577
    %v579 = vsel %vm223, %v522, -inf
    %v580 = vmax.f32 %v578, %v579
    %v581 = vsel %vm223, %v524, -inf
    %v582 = vmax.f32 %v580, %v581
    %v583 = vsel %vm223, %v526, -inf
    %v584 = vmax.f32 %v582, %v583
    %v585 = vsel %vm73, %v527, -inf
    %v586 = vsel %vm73, %v529, -inf
    %v587 = vmax.f32 %v585, %v586
    %v588 = vsel %vm73, %v531, -inf
    %v589 = vmax.f32 %v587, %v588
    %v590 = vsel %vm73, %v533, -inf
    %v591 = vmax.f32 %v589, %v590
    %v592 = vsel %vm73, %v535, -inf
    %v593 = vmax.f32 %v591, %v592
    %v594 = vsel %vm73, %v537, -inf
    %v595 = vmax.f32 %v593, %v594
    %v596 = vsel %vm73, %v539, -inf
    %v597 = vmax.f32 %v595, %v596
    %v598 = vsel %vm73, %v541, -inf
    %v599 = vmax.f32 %v597, %v598
    %v600 = vsel %vm73, %v543, -inf
    %v601 = vmax.f32 %v599, %v600
    %v602 = vsel %vm73, %v545, -inf
    %v603 = vmax.f32 %v601, %v602
    %v604 = vsel %vm223, %v528, -inf
    %v605 = vsel %vm223, %v530, -inf
    %v606 = vmax.f32 %v604, %v605
    %v607 = vsel %vm223, %v532, -inf
    %v608 = vmax.f32 %v606, %v607
    %v609 = vsel %vm223, %v534, -inf
    %v610 = vmax.f32 %v608, %v609
    %v611 = vsel %vm223, %v536, -inf
    %v612 = vmax.f32 %v610, %v611
    %v613 = vsel %vm223, %v538, -inf
    %v614 = vmax.f32 %v612, %v613
    %v615 = vsel %vm223, %v540, -inf
    %v616 = vmax.f32 %v614, %v615
    %v617 = vsel %vm223, %v542, -inf
    %v618 = vmax.f32 %v616, %v617
    %v619 = vsel %vm223, %v544, -inf
    %v620 = vmax.f32 %v618, %v619
    %v621 = vsel %vm223, %v546, -inf
    %v622 = vmax.f32 %v620, %v621
    %v623 = vsel %vm73, %v565, -inf
    %v624 = vsel %vm223, %v584, -inf
    %v625 = vmax.f32 %v623, %v624
    %v626 = vrot.slane %v625, 4
    %v627 = vmax.f32 %v625, %v626
    %v628 = vrot.slane %v627, 2
    %v629 = vmax.f32 %v627, %v628
    %v630 = vrot.slane %v629, 1
    %v631 = vmax.f32 %v629, %v630
    %v632 = vsel %vm73, %v603, -inf
    %v633 = vsel %vm223, %v622, -inf
    %v634 = vmax.f32 %v632, %v633
    %v635 = vrot.slane %v634, 4
    %v636 = vmax.f32 %v634, %v635
    %v637 = vrot.slane %v636, 2
    %v638 = vmax.f32 %v636, %v637
    %v639 = vrot.slane %v638, 1
    %v640 = vmax.f32 %v638, %v639
    %v641 = vmul.f32 %v631, %v631
    %v642 = vmul.f32 %v640, %v640
    %v645 = vsel %vm220, %v642, %v641
    %v647 = vsel %vm223, %v645, 0.0
    %648 = vadd.xlane.f32.xlu0 %v647
    %v649 = vpop.xlane.xlu0 %648
    %v650 = vrsqrt.pop %v649
    %v651 = vmul.f32 %v649, %v650
    %vm652 = vcmp.eq.f32.partialorder %v649, inf
    %v653 = vsel %vm652, %v649, %v651
    %vm654 = vcmp.eq.f32.partialorder %v649, 0.0
    %v655 = vand.u32 %v649, 2147483648
    %v656 = vsel %vm654, %v655, %v653
    %v657 = vadd.f32 %v656, 1e-06
    %v658 = vrcp.pop %v657
    %v660 = vrot.slane %v658, 1
    %v663 = vmul.f32 %v631, %v658
    %v664 = vmul.f32 %v640, %v660
    %v665 = vadd.f32 %v504, %v663
    %v666 = vadd.f32 %v505, %v664
    %v667 = vld [vmem:[%s506 + $0x6] sm:$0xff]
    %v668 = vld [vmem:[%s506 + $0xe] sm:$0x3]
    %v669 = vld [vmem:[%s506 + $0x16] sm:$0xff]
    %v670 = vld [vmem:[%s506 + $0x1e] sm:$0x3]
    %v671 = vld [vmem:[%s506 + $0x26] sm:$0xff]
    %v672 = vld [vmem:[%s506 + $0x2e] sm:$0x3]
    %v673 = vld [vmem:[%s506 + $0x36] sm:$0xff]
    %v674 = vld [vmem:[%s506 + $0x3e] sm:$0x3]
    %v675 = vld [vmem:[%s506 + $0x46] sm:$0xff]
    %v676 = vld [vmem:[%s506 + $0x4e] sm:$0x3]
    %v677 = vld [vmem:[%s506 + $0x56] sm:$0xff]
    %v678 = vld [vmem:[%s506 + $0x5e] sm:$0x3]
    %v679 = vld [vmem:[%s506 + $0x66] sm:$0xff]
    %v680 = vld [vmem:[%s506 + $0x6e] sm:$0x3]
    %v681 = vld [vmem:[%s506 + $0x76] sm:$0xff]
    %v682 = vld [vmem:[%s506 + $0x7e] sm:$0x3]
    %v683 = vld [vmem:[%s506 + $0x86] sm:$0xff]
    %v684 = vld [vmem:[%s506 + $0x8e] sm:$0x3]
    %v685 = vld [vmem:[%s506 + $0x96] sm:$0xff]
    %v686 = vld [vmem:[%s506 + $0x9e] sm:$0x3]
    %v687 = vld [vmem:[%s506 + $0x106] sm:$0xff]
    %v688 = vld [vmem:[%s506 + $0x10e] sm:$0x3]
    %v689 = vld [vmem:[%s506 + $0x116] sm:$0xff]
    %v690 = vld [vmem:[%s506 + $0x11e] sm:$0x3]
    %v691 = vld [vmem:[%s506 + $0x126] sm:$0xff]
    %v692 = vld [vmem:[%s506 + $0x12e] sm:$0x3]
    %v693 = vld [vmem:[%s506 + $0x136] sm:$0xff]
    %v694 = vld [vmem:[%s506 + $0x13e] sm:$0x3]
    %v695 = vld [vmem:[%s506 + $0x146] sm:$0xff]
    %v696 = vld [vmem:[%s506 + $0x14e] sm:$0x3]
    %v697 = vld [vmem:[%s506 + $0x156] sm:$0xff]
    %v698 = vld [vmem:[%s506 + $0x15e] sm:$0x3]
    %v699 = vld [vmem:[%s506 + $0x166] sm:$0xff]
    %v700 = vld [vmem:[%s506 + $0x16e] sm:$0x3]
    %v701 = vld [vmem:[%s506 + $0x176] sm:$0xff]
    %v702 = vld [vmem:[%s506 + $0x17e] sm:$0x3]
    %v703 = vld [vmem:[%s506 + $0x186] sm:$0xff]
    %v704 = vld [vmem:[%s506 + $0x18e] sm:$0x3]
    %v705 = vld [vmem:[%s506 + $0x196] sm:$0xff]
    %v706 = vld [vmem:[%s506 + $0x19e] sm:$0x3]
    %v707 = vsel %vm73, %v667, -inf
    %v708 = vsel %vm73, %v669, -inf
    %v709 = vmax.f32 %v707, %v708
    %v710 = vsel %vm73, %v671, -inf
    %v711 = vmax.f32 %v709, %v710
    %v712 = vsel %vm73, %v673, -inf
    %v713 = vmax.f32 %v711, %v712
    %v714 = vsel %vm73, %v675, -inf
    %v715 = vmax.f32 %v713, %v714
    %v716 = vsel %vm73, %v677, -inf
    %v717 = vmax.f32 %v715, %v716
    %v718 = vsel %vm73, %v679, -inf
    %v719 = vmax.f32 %v717, %v718
    %v720 = vsel %vm73, %v681, -inf
    %v721 = vmax.f32 %v719, %v720
    %v722 = vsel %vm73, %v683, -inf
    %v723 = vmax.f32 %v721, %v722
    %v724 = vsel %vm73, %v685, -inf
    %v725 = vmax.f32 %v723, %v724
    %v726 = vsel %vm223, %v668, -inf
    %v727 = vsel %vm223, %v670, -inf
    %v728 = vmax.f32 %v726, %v727
    %v729 = vsel %vm223, %v672, -inf
    %v730 = vmax.f32 %v728, %v729
    %v731 = vsel %vm223, %v674, -inf
    %v732 = vmax.f32 %v730, %v731
    %v733 = vsel %vm223, %v676, -inf
    %v734 = vmax.f32 %v732, %v733
    %v735 = vsel %vm223, %v678, -inf
    %v736 = vmax.f32 %v734, %v735
    %v737 = vsel %vm223, %v680, -inf
    %v738 = vmax.f32 %v736, %v737
    %v739 = vsel %vm223, %v682, -inf
    %v740 = vmax.f32 %v738, %v739
    %v741 = vsel %vm223, %v684, -inf
    %v742 = vmax.f32 %v740, %v741
    %v743 = vsel %vm223, %v686, -inf
    %v744 = vmax.f32 %v742, %v743
    %v745 = vsel %vm73, %v687, -inf
    %v746 = vsel %vm73, %v689, -inf
    %v747 = vmax.f32 %v745, %v746
    %v748 = vsel %vm73, %v691, -inf
    %v749 = vmax.f32 %v747, %v748
    %v750 = vsel %vm73, %v693, -inf
    %v751 = vmax.f32 %v749, %v750
    %v752 = vsel %vm73, %v695, -inf
    %v753 = vmax.f32 %v751, %v752
    %v754 = vsel %vm73, %v697, -inf
    %v755 = vmax.f32 %v753, %v754
    %v756 = vsel %vm73, %v699, -inf
    %v757 = vmax.f32 %v755, %v756
    %v758 = vsel %vm73, %v701, -inf
    %v759 = vmax.f32 %v757, %v758
    %v760 = vsel %vm73, %v703, -inf
    %v761 = vmax.f32 %v759, %v760
    %v762 = vsel %vm73, %v705, -inf
    %v763 = vmax.f32 %v761, %v762
    %v764 = vsel %vm223, %v688, -inf
    %v765 = vsel %vm223, %v690, -inf
    %v766 = vmax.f32 %v764, %v765
    %v767 = vsel %vm223, %v692, -inf
    %v768 = vmax.f32 %v766, %v767
    %v769 = vsel %vm223, %v694, -inf
    %v770 = vmax.f32 %v768, %v769
    %v771 = vsel %vm223, %v696, -inf
    %v772 = vmax.f32 %v770, %v771
    %v773 = vsel %vm223, %v698, -inf
    %v774 = vmax.f32 %v772, %v773
    %v775 = vsel %vm223, %v700, -inf
    %v776 = vmax.f32 %v774, %v775
    %v777 = vsel %vm223, %v702, -inf
    %v778 = vmax.f32 %v776, %v777
    %v779 = vsel %vm223, %v704, -inf
    %v780 = vmax.f32 %v778, %v779
    %v781 = vsel %vm223, %v706, -inf
    %v782 = vmax.f32 %v780, %v781
    %v783 = vsel %vm73, %v725, -inf
    %v784 = vsel %vm223, %v744, -inf
    %v785 = vmax.f32 %v783, %v784
    %v786 = vrot.slane %v785, 4
    %v787 = vmax.f32 %v785, %v786
    %v788 = vrot.slane %v787, 2
    %v789 = vmax.f32 %v787, %v788
    %v790 = vrot.slane %v789, 1
    %v791 = vmax.f32 %v789, %v790
    %v792 = vsel %vm73, %v763, -inf
    %v793 = vsel %vm223, %v782, -inf
    %v794 = vmax.f32 %v792, %v793
    %v795 = vrot.slane %v794, 4
    %v796 = vmax.f32 %v794, %v795
    %v797 = vrot.slane %v796, 2
    %v798 = vmax.f32 %v796, %v797
    %v799 = vrot.slane %v798, 1
    %v800 = vmax.f32 %v798, %v799
    %v801 = vmul.f32 %v791, %v791
    %v802 = vmul.f32 %v800, %v800
    %v805 = vsel %vm220, %v802, %v801
    %v807 = vsel %vm223, %v805, 0.0
    %808 = vadd.xlane.f32.xlu0 %v807
    %v809 = vpop.xlane.xlu0 %808
    %v810 = vrsqrt.pop %v809
    %v811 = vmul.f32 %v809, %v810
    %vm812 = vcmp.eq.f32.partialorder %v809, inf
    %v813 = vsel %vm812, %v809, %v811
    %vm814 = vcmp.eq.f32.partialorder %v809, 0.0
    %v815 = vand.u32 %v809, 2147483648
    %v816 = vsel %vm814, %v815, %v813
    %v817 = vadd.f32 %v816, 1e-06
    %v818 = vrcp.pop %v817
    %v820 = vrot.slane %v818, 1
    %v823 = vmul.f32 %v791, %v818
    %v824 = vmul.f32 %v800, %v820
    %v825 = vadd.f32 %v665, %v823
    %v826 = vadd.f32 %v666, %v824
    %v827 = vmax.f32 %v74, %v77
    %v828 = vmax.f32 %v75, %v79
    %v829 = vmax.f32 %v827, %v81
    %v830 = vmax.f32 %v828, %v83
    %v831 = vmax.f32 %v829, %v85
    %v832 = vmax.f32 %v830, %v87
    %v833 = vmax.f32 %v831, %v832
    %v834 = vmax.f32 %v136, %v139
    %v835 = vmax.f32 %v137, %v141
    %v836 = vmax.f32 %v834, %v143
    %v837 = vmax.f32 %v835, %v145
    %v838 = vmax.f32 %v836, %v147
    %v839 = vmax.f32 %v837, %v149
    %v840 = vmax.f32 %v838, %v839
    %v841 = vsel %vm73, %v833, -inf
    %v842 = vrot.slane %v841, 4
    %v843 = vmax.f32 %v841, %v842
    %v844 = vrot.slane %v843, 2
    %v845 = vmax.f32 %v843, %v844
    %v846 = vrot.slane %v845, 1
    %v847 = vmax.f32 %v845, %v846
    %v848 = vsel %vm73, %v840, -inf
    %v849 = vrot.slane %v848, 4
    %v850 = vmax.f32 %v848, %v849
    %v851 = vrot.slane %v850, 2
    %v852 = vmax.f32 %v850, %v851
    %v853 = vrot.slane %v852, 1
    %v854 = vmax.f32 %v852, %v853
    %v855 = vmul.f32 %v847, %v847
    %v856 = vmul.f32 %v854, %v854
    %v859 = vsel %vm220, %v856, %v855
    %v861 = vsel %vm223, %v859, 0.0
    %862 = vadd.xlane.f32.xlu0 %v861
    %v863 = vpop.xlane.xlu0 %862
    %v864 = vrsqrt.pop %v863
    %v865 = vmul.f32 %v863, %v864
    %vm866 = vcmp.eq.f32.partialorder %v863, inf
    %v867 = vsel %vm866, %v863, %v865
    %vm868 = vcmp.eq.f32.partialorder %v863, 0.0
    %v869 = vand.u32 %v863, 2147483648
    %v870 = vsel %vm868, %v869, %v867
    %v871 = vadd.f32 %v870, 1e-06
    %v872 = vrcp.pop %v871
    %v874 = vrot.slane %v872, 1
    %v877 = vmul.f32 %v847, %v872
    %v878 = vmul.f32 %v854, %v874
    %v879 = vadd.f32 %v825, %v877
    %v880 = vadd.f32 %v826, %v878
    %v881 = vld [vmem:[%s0 + $0x4] sm:$0xff]
    %v882 = vld [vmem:[%s0 + $0x14] sm:$0xff]
    %v883 = vld [vmem:[%s0 + $0x24] sm:$0xff]
    %v884 = vld [vmem:[%s0 + $0x34] sm:$0xff]
    %v885 = vld [vmem:[%s0 + $0x44] sm:$0xff]
    %v886 = vld [vmem:[%s0 + $0x54] sm:$0xff]
    %v887 = vld [vmem:[%s0 + $0x64] sm:$0xff]
    %v888 = vld [vmem:[%s0 + $0x74] sm:$0xff]
    %v889 = vld [vmem:[%s0 + $0x104] sm:$0xff]
    %v890 = vld [vmem:[%s0 + $0x114] sm:$0xff]
    %v891 = vld [vmem:[%s0 + $0x124] sm:$0xff]
    %v892 = vld [vmem:[%s0 + $0x134] sm:$0xff]
    %v893 = vld [vmem:[%s0 + $0x144] sm:$0xff]
    %v894 = vld [vmem:[%s0 + $0x154] sm:$0xff]
    %v895 = vld [vmem:[%s0 + $0x164] sm:$0xff]
    %v896 = vld [vmem:[%s0 + $0x174] sm:$0xff]
    %v897 = vsel %vm73, %v881, -inf
    %v898 = vsel %vm73, %v882, -inf
    %v899 = vsel %vm73, %v883, -inf
    %v900 = vmax.f32 %v897, %v899
    %v901 = vsel %vm73, %v884, -inf
    %v902 = vmax.f32 %v898, %v901
    %v903 = vsel %vm73, %v885, -inf
    %v904 = vmax.f32 %v900, %v903
    %v905 = vsel %vm73, %v886, -inf
    %v906 = vmax.f32 %v902, %v905
    %v907 = vsel %vm73, %v887, -inf
    %v908 = vmax.f32 %v904, %v907
    %v909 = vsel %vm73, %v888, -inf
    %v910 = vmax.f32 %v906, %v909
    %v911 = vmax.f32 %v908, %v910
    %v912 = vsel %vm73, %v889, -inf
    %v913 = vsel %vm73, %v890, -inf
    %v914 = vsel %vm73, %v891, -inf
    %v915 = vmax.f32 %v912, %v914
    %v916 = vsel %vm73, %v892, -inf
    %v917 = vmax.f32 %v913, %v916
    %v918 = vsel %vm73, %v893, -inf
    %v919 = vmax.f32 %v915, %v918
    %v920 = vsel %vm73, %v894, -inf
    %v921 = vmax.f32 %v917, %v920
    %v922 = vsel %vm73, %v895, -inf
    %v923 = vmax.f32 %v919, %v922
    %v924 = vsel %vm73, %v896, -inf
    %v925 = vmax.f32 %v921, %v924
    %v926 = vmax.f32 %v923, %v925
    %v927 = vsel %vm73, %v911, -inf
    %v928 = vrot.slane %v927, 4
    %v929 = vmax.f32 %v927, %v928
    %v930 = vrot.slane %v929, 2
    %v931 = vmax.f32 %v929, %v930
    %v932 = vrot.slane %v931, 1
    %v933 = vmax.f32 %v931, %v932
    %v934 = vsel %vm73, %v926, -inf
    %v935 = vrot.slane %v934, 4
    %v936 = vmax.f32 %v934, %v935
    %v937 = vrot.slane %v936, 2
    %v938 = vmax.f32 %v936, %v937
    %v939 = vrot.slane %v938, 1
    %v940 = vmax.f32 %v938, %v939
    %v941 = vmul.f32 %v933, %v933
    %v942 = vmul.f32 %v940, %v940
    %v945 = vsel %vm220, %v942, %v941
    %v947 = vsel %vm223, %v945, 0.0
    %948 = vadd.xlane.f32.xlu0 %v947
    %v949 = vpop.xlane.xlu0 %948
    %v950 = vrsqrt.pop %v949
    %v951 = vmul.f32 %v949, %v950
    %vm952 = vcmp.eq.f32.partialorder %v949, inf
    %v953 = vsel %vm952, %v949, %v951
    %vm954 = vcmp.eq.f32.partialorder %v949, 0.0
    %v955 = vand.u32 %v949, 2147483648
    %v956 = vsel %vm954, %v955, %v953
    %v957 = vadd.f32 %v956, 1e-06
    %v958 = vrcp.pop %v957
    %v960 = vrot.slane %v958, 1
    %v963 = vmul.f32 %v933, %v958
    %v964 = vmul.f32 %v940, %v960
    %v965 = vadd.f32 %v879, %v963
    %v966 = vadd.f32 %v880, %v964
    %v967 = vmax.f32 %v105, %v108
    %v968 = vmax.f32 %v106, %v110
    %v969 = vmax.f32 %v967, %v112
    %v970 = vmax.f32 %v968, %v114
    %v971 = vmax.f32 %v969, %v116
    %v972 = vmax.f32 %v970, %v118
    %v973 = vmax.f32 %v971, %v972
    %v974 = vmax.f32 %v167, %v170
    %v975 = vmax.f32 %v168, %v172
    %v976 = vmax.f32 %v974, %v174
    %v977 = vmax.f32 %v975, %v176
    %v978 = vmax.f32 %v976, %v178
    %v979 = vmax.f32 %v977, %v180
    %v980 = vmax.f32 %v978, %v979
    %v981 = vsel %vm73, %v973, -inf
    %v982 = vrot.slane %v981, 4
    %v983 = vmax.f32 %v981, %v982
    %v984 = vrot.slane %v983, 2
    %v985 = vmax.f32 %v983, %v984
    %v986 = vrot.slane %v985, 1
    %v987 = vmax.f32 %v985, %v986
    %v988 = vsel %vm73, %v980, -inf
    %v989 = vrot.slane %v988, 4
    %v990 = vmax.f32 %v988, %v989
    %v991 = vrot.slane %v990, 2
    %v992 = vmax.f32 %v990, %v991
    %v993 = vrot.slane %v992, 1
    %v994 = vmax.f32 %v992, %v993
    %v995 = vmul.f32 %v987, %v987
    %v996 = vmul.f32 %v994, %v994
    %v999 = vsel %vm220, %v996, %v995
    %v1001 = vsel %vm223, %v999, 0.0
    %1002 = vadd.xlane.f32.xlu0 %v1001
    %v1003 = vpop.xlane.xlu0 %1002
    %v1004 = vrsqrt.pop %v1003
    %v1005 = vmul.f32 %v1003, %v1004
    %vm1006 = vcmp.eq.f32.partialorder %v1003, inf
    %v1007 = vsel %vm1006, %v1003, %v1005
    %vm1008 = vcmp.eq.f32.partialorder %v1003, 0.0
    %v1009 = vand.u32 %v1003, 2147483648
    %v1010 = vsel %vm1008, %v1009, %v1007
    %v1011 = vadd.f32 %v1010, 1e-06
    %v1012 = vrcp.pop %v1011
    %v1014 = vrot.slane %v1012, 1
    %v1017 = vmul.f32 %v987, %v1012
    %v1018 = vmul.f32 %v994, %v1014
    %v1019 = vadd.f32 %v965, %v1017
    %v1020 = vadd.f32 %v966, %v1018
    %s1021 = scalar_lea.vmem %s0, 64
    %v1022 = vld [vmem:[%s1021] sm:$0xff]
    %v1023 = vld [vmem:[%s1021 + $0x10] sm:$0xff]
    %v1024 = vld [vmem:[%s1021 + $0x20] sm:$0xff]
    %v1025 = vld [vmem:[%s1021 + $0x30] sm:$0xff]
    %v1026 = vld [vmem:[%s1021 + $0x40] sm:$0xff]
    %v1027 = vld [vmem:[%s1021 + $0x50] sm:$0xff]
    %v1028 = vld [vmem:[%s1021 + $0x60] sm:$0xff]
    %v1029 = vld [vmem:[%s1021 + $0x70] sm:$0xff]
    %v1030 = vld [vmem:[%s1021 + $0x100] sm:$0xff]
    %v1031 = vld [vmem:[%s1021 + $0x110] sm:$0xff]
    %v1032 = vld [vmem:[%s1021 + $0x120] sm:$0xff]
    %v1033 = vld [vmem:[%s1021 + $0x130] sm:$0xff]
    %v1034 = vld [vmem:[%s1021 + $0x140] sm:$0xff]
    %v1035 = vld [vmem:[%s1021 + $0x150] sm:$0xff]
    %v1036 = vld [vmem:[%s1021 + $0x160] sm:$0xff]
    %v1037 = vld [vmem:[%s1021 + $0x170] sm:$0xff]
    %v1038 = vsel %vm73, %v1022, -inf
    %v1039 = vsel %vm73, %v1023, -inf
    %v1040 = vsel %vm73, %v1024, -inf
    %v1041 = vmax.f32 %v1038, %v1040
    %v1042 = vsel %vm73, %v1025, -inf
    %v1043 = vmax.f32 %v1039, %v1042
    %v1044 = vsel %vm73, %v1026, -inf
    %v1045 = vmax.f32 %v1041, %v1044
    %v1046 = vsel %vm73, %v1027, -inf
    %v1047 = vmax.f32 %v1043, %v1046
    %v1048 = vsel %vm73, %v1028, -inf
    %v1049 = vmax.f32 %v1045, %v1048
    %v1050 = vsel %vm73, %v1029, -inf
    %v1051 = vmax.f32 %v1047, %v1050
    %v1052 = vmax.f32 %v1049, %v1051
    %v1053 = vsel %vm73, %v1030, -inf
    %v1054 = vsel %vm73, %v1031, -inf
    %v1055 = vsel %vm73, %v1032, -inf
    %v1056 = vmax.f32 %v1053, %v1055
    %v1057 = vsel %vm73, %v1033, -inf
    %v1058 = vmax.f32 %v1054, %v1057
    %v1059 = vsel %vm73, %v1034, -inf
    %v1060 = vmax.f32 %v1056, %v1059
    %v1061 = vsel %vm73, %v1035, -inf
    %v1062 = vmax.f32 %v1058, %v1061
    %v1063 = vsel %vm73, %v1036, -inf
    %v1064 = vmax.f32 %v1060, %v1063
    %v1065 = vsel %vm73, %v1037, -inf
    %v1066 = vmax.f32 %v1062, %v1065
    %v1067 = vmax.f32 %v1064, %v1066
    %v1068 = vsel %vm73, %v1052, -inf
    %v1069 = vrot.slane %v1068, 4
    %v1070 = vmax.f32 %v1068, %v1069
    %v1071 = vrot.slane %v1070, 2
    %v1072 = vmax.f32 %v1070, %v1071
    %v1073 = vrot.slane %v1072, 1
    %v1074 = vmax.f32 %v1072, %v1073
    %v1075 = vsel %vm73, %v1067, -inf
    %v1076 = vrot.slane %v1075, 4
    %v1077 = vmax.f32 %v1075, %v1076
    %v1078 = vrot.slane %v1077, 2
    %v1079 = vmax.f32 %v1077, %v1078
    %v1080 = vrot.slane %v1079, 1
    %v1081 = vmax.f32 %v1079, %v1080
    %v1082 = vmul.f32 %v1074, %v1074
    %v1083 = vmul.f32 %v1081, %v1081
    %v1086 = vsel %vm220, %v1083, %v1082
    %v1088 = vsel %vm223, %v1086, 0.0
    %1089 = vadd.xlane.f32.xlu0 %v1088
    %v1090 = vpop.xlane.xlu0 %1089
    %v1091 = vrsqrt.pop %v1090
    %v1092 = vmul.f32 %v1090, %v1091
    %vm1093 = vcmp.eq.f32.partialorder %v1090, inf
    %v1094 = vsel %vm1093, %v1090, %v1092
    %vm1095 = vcmp.eq.f32.partialorder %v1090, 0.0
    %v1096 = vand.u32 %v1090, 2147483648
    %v1097 = vsel %vm1095, %v1096, %v1094
    %v1098 = vadd.f32 %v1097, 1e-06
    %v1099 = vrcp.pop %v1098
    %v1101 = vrot.slane %v1099, 1
    %v1104 = vmul.f32 %v1074, %v1099
    %v1105 = vmul.f32 %v1081, %v1101
    %v1106 = vadd.f32 %v1019, %v1104
    %v1107 = vadd.f32 %v1020, %v1105
    %v1108 = vld [vmem:[%s1021 + $0x4] sm:$0xff]
    %v1109 = vld [vmem:[%s1021 + $0x14] sm:$0xff]
    %v1110 = vld [vmem:[%s1021 + $0x24] sm:$0xff]
    %v1111 = vld [vmem:[%s1021 + $0x34] sm:$0xff]
    %v1112 = vld [vmem:[%s1021 + $0x44] sm:$0xff]
    %v1113 = vld [vmem:[%s1021 + $0x54] sm:$0xff]
    %v1114 = vld [vmem:[%s1021 + $0x64] sm:$0xff]
    %v1115 = vld [vmem:[%s1021 + $0x74] sm:$0xff]
    %v1116 = vld [vmem:[%s1021 + $0x104] sm:$0xff]
    %v1117 = vld [vmem:[%s1021 + $0x114] sm:$0xff]
    %v1118 = vld [vmem:[%s1021 + $0x124] sm:$0xff]
    %v1119 = vld [vmem:[%s1021 + $0x134] sm:$0xff]
    %v1120 = vld [vmem:[%s1021 + $0x144] sm:$0xff]
    %v1121 = vld [vmem:[%s1021 + $0x154] sm:$0xff]
    %v1122 = vld [vmem:[%s1021 + $0x164] sm:$0xff]
    %v1123 = vld [vmem:[%s1021 + $0x174] sm:$0xff]
    %v1124 = vsel %vm73, %v1108, -inf
    %v1125 = vsel %vm73, %v1109, -inf
    %v1126 = vsel %vm73, %v1110, -inf
    %v1127 = vmax.f32 %v1124, %v1126
    %v1128 = vsel %vm73, %v1111, -inf
    %v1129 = vmax.f32 %v1125, %v1128
    %v1130 = vsel %vm73, %v1112, -inf
    %v1131 = vmax.f32 %v1127, %v1130
    %v1132 = vsel %vm73, %v1113, -inf
    %v1133 = vmax.f32 %v1129, %v1132
    %v1134 = vsel %vm73, %v1114, -inf
    %v1135 = vmax.f32 %v1131, %v1134
    %v1136 = vsel %vm73, %v1115, -inf
    %v1137 = vmax.f32 %v1133, %v1136
    %v1138 = vmax.f32 %v1135, %v1137
    %v1139 = vsel %vm73, %v1116, -inf
    %v1140 = vsel %vm73, %v1117, -inf
    %v1141 = vsel %vm73, %v1118, -inf
    %v1142 = vmax.f32 %v1139, %v1141
    %v1143 = vsel %vm73, %v1119, -inf
    %v1144 = vmax.f32 %v1140, %v1143
    %v1145 = vsel %vm73, %v1120, -inf
    %v1146 = vmax.f32 %v1142, %v1145
    %v1147 = vsel %vm73, %v1121, -inf
    %v1148 = vmax.f32 %v1144, %v1147
    %v1149 = vsel %vm73, %v1122, -inf
    %v1150 = vmax.f32 %v1146, %v1149
    %v1151 = vsel %vm73, %v1123, -inf
    %v1152 = vmax.f32 %v1148, %v1151
    %v1153 = vmax.f32 %v1150, %v1152
    %v1154 = vsel %vm73, %v1138, -inf
    %v1155 = vrot.slane %v1154, 4
    %v1156 = vmax.f32 %v1154, %v1155
    %v1157 = vrot.slane %v1156, 2
    %v1158 = vmax.f32 %v1156, %v1157
    %v1159 = vrot.slane %v1158, 1
    %v1160 = vmax.f32 %v1158, %v1159
    %v1161 = vsel %vm73, %v1153, -inf
    %v1162 = vrot.slane %v1161, 4
    %v1163 = vmax.f32 %v1161, %v1162
    %v1164 = vrot.slane %v1163, 2
    %v1165 = vmax.f32 %v1163, %v1164
    %v1166 = vrot.slane %v1165, 1
    %v1167 = vmax.f32 %v1165, %v1166
    %v1168 = vmul.f32 %v1160, %v1160
    %v1169 = vmul.f32 %v1167, %v1167
    %v1172 = vsel %vm220, %v1169, %v1168
    %v1174 = vsel %vm223, %v1172, 0.0
    %1175 = vadd.xlane.f32.xlu0 %v1174
    %v1176 = vpop.xlane.xlu0 %1175
    %v1177 = vrsqrt.pop %v1176
    %v1178 = vmul.f32 %v1176, %v1177
    %vm1179 = vcmp.eq.f32.partialorder %v1176, inf
    %v1180 = vsel %vm1179, %v1176, %v1178
    %vm1181 = vcmp.eq.f32.partialorder %v1176, 0.0
    %v1182 = vand.u32 %v1176, 2147483648
    %v1183 = vsel %vm1181, %v1182, %v1180
    %v1184 = vadd.f32 %v1183, 1e-06
    %v1185 = vrcp.pop %v1184
    %v1187 = vrot.slane %v1185, 1
    %v1190 = vmul.f32 %v1160, %v1185
    %v1191 = vmul.f32 %v1167, %v1187
    %v1192 = vadd.f32 %v1106, %v1190
    %v1193 = vadd.f32 %v1107, %v1191
    %v1194 = vld [vmem:[%s1021 + $0x8] sm:$0xff]
    %v1195 = vld [vmem:[%s1021 + $0x18] sm:$0xff]
    %v1196 = vld [vmem:[%s1021 + $0x28] sm:$0xff]
    %v1197 = vld [vmem:[%s1021 + $0x38] sm:$0xff]
    %v1198 = vld [vmem:[%s1021 + $0x48] sm:$0xff]
    %v1199 = vld [vmem:[%s1021 + $0x58] sm:$0xff]
    %v1200 = vld [vmem:[%s1021 + $0x68] sm:$0xff]
    %v1201 = vld [vmem:[%s1021 + $0x78] sm:$0xff]
    %v1202 = vld [vmem:[%s1021 + $0x108] sm:$0xff]
    %v1203 = vld [vmem:[%s1021 + $0x118] sm:$0xff]
    %v1204 = vld [vmem:[%s1021 + $0x128] sm:$0xff]
    %v1205 = vld [vmem:[%s1021 + $0x138] sm:$0xff]
    %v1206 = vld [vmem:[%s1021 + $0x148] sm:$0xff]
    %v1207 = vld [vmem:[%s1021 + $0x158] sm:$0xff]
    %v1208 = vld [vmem:[%s1021 + $0x168] sm:$0xff]
    %v1209 = vld [vmem:[%s1021 + $0x178] sm:$0xff]
    %v1210 = vsel %vm73, %v1194, -inf
    %v1211 = vsel %vm73, %v1195, -inf
    %v1212 = vsel %vm73, %v1196, -inf
    %v1213 = vmax.f32 %v1210, %v1212
    %v1214 = vsel %vm73, %v1197, -inf
    %v1215 = vmax.f32 %v1211, %v1214
    %v1216 = vsel %vm73, %v1198, -inf
    %v1217 = vmax.f32 %v1213, %v1216
    %v1218 = vsel %vm73, %v1199, -inf
    %v1219 = vmax.f32 %v1215, %v1218
    %v1220 = vsel %vm73, %v1200, -inf
    %v1221 = vmax.f32 %v1217, %v1220
    %v1222 = vsel %vm73, %v1201, -inf
    %v1223 = vmax.f32 %v1219, %v1222
    %v1224 = vmax.f32 %v1221, %v1223
    %v1225 = vsel %vm73, %v1202, -inf
    %v1226 = vsel %vm73, %v1203, -inf
    %v1227 = vsel %vm73, %v1204, -inf
    %v1228 = vmax.f32 %v1225, %v1227
    %v1229 = vsel %vm73, %v1205, -inf
    %v1230 = vmax.f32 %v1226, %v1229
    %v1231 = vsel %vm73, %v1206, -inf
    %v1232 = vmax.f32 %v1228, %v1231
    %v1233 = vsel %vm73, %v1207, -inf
    %v1234 = vmax.f32 %v1230, %v1233
    %v1235 = vsel %vm73, %v1208, -inf
    %v1236 = vmax.f32 %v1232, %v1235
    %v1237 = vsel %vm73, %v1209, -inf
    %v1238 = vmax.f32 %v1234, %v1237
    %v1239 = vmax.f32 %v1236, %v1238
    %v1240 = vsel %vm73, %v1224, -inf
    %v1241 = vrot.slane %v1240, 4
    %v1242 = vmax.f32 %v1240, %v1241
    %v1243 = vrot.slane %v1242, 2
    %v1244 = vmax.f32 %v1242, %v1243
    %v1245 = vrot.slane %v1244, 1
    %v1246 = vmax.f32 %v1244, %v1245
    %v1247 = vsel %vm73, %v1239, -inf
    %v1248 = vrot.slane %v1247, 4
    %v1249 = vmax.f32 %v1247, %v1248
    %v1250 = vrot.slane %v1249, 2
    %v1251 = vmax.f32 %v1249, %v1250
    %v1252 = vrot.slane %v1251, 1
    %v1253 = vmax.f32 %v1251, %v1252
    %v1254 = vmul.f32 %v1246, %v1246
    %v1255 = vmul.f32 %v1253, %v1253
    %v1258 = vsel %vm220, %v1255, %v1254
    %v1260 = vsel %vm223, %v1258, 0.0
    %1261 = vadd.xlane.f32.xlu0 %v1260
    %v1262 = vpop.xlane.xlu0 %1261
    %v1263 = vrsqrt.pop %v1262
    %v1264 = vmul.f32 %v1262, %v1263
    %vm1265 = vcmp.eq.f32.partialorder %v1262, inf
    %v1266 = vsel %vm1265, %v1262, %v1264
    %vm1267 = vcmp.eq.f32.partialorder %v1262, 0.0
    %v1268 = vand.u32 %v1262, 2147483648
    %v1269 = vsel %vm1267, %v1268, %v1266
    %v1270 = vadd.f32 %v1269, 1e-06
    %v1271 = vrcp.pop %v1270
    %v1273 = vrot.slane %v1271, 1
    %v1276 = vmul.f32 %v1246, %v1271
    %v1277 = vmul.f32 %v1253, %v1273
    %v1278 = vadd.f32 %v1192, %v1276
    %v1279 = vadd.f32 %v1193, %v1277
    %s1280 = scalar_lea.vmem %s0, 128
    %v1281 = vld [vmem:[%s1280] sm:$0xff]
    %v1282 = vld [vmem:[%s1280 + $0x10] sm:$0xff]
    %v1283 = vld [vmem:[%s1280 + $0x20] sm:$0xff]
    %v1284 = vld [vmem:[%s1280 + $0x30] sm:$0xff]
    %v1285 = vld [vmem:[%s1280 + $0x40] sm:$0xff]
    %v1286 = vld [vmem:[%s1280 + $0x50] sm:$0xff]
    %v1287 = vld [vmem:[%s1280 + $0x60] sm:$0xff]
    %v1288 = vld [vmem:[%s1280 + $0x70] sm:$0xff]
    %v1289 = vld [vmem:[%s1280 + $0x100] sm:$0xff]
    %v1290 = vld [vmem:[%s1280 + $0x110] sm:$0xff]
    %v1291 = vld [vmem:[%s1280 + $0x120] sm:$0xff]
    %v1292 = vld [vmem:[%s1280 + $0x130] sm:$0xff]
    %v1293 = vld [vmem:[%s1280 + $0x140] sm:$0xff]
    %v1294 = vld [vmem:[%s1280 + $0x150] sm:$0xff]
    %v1295 = vld [vmem:[%s1280 + $0x160] sm:$0xff]
    %v1296 = vld [vmem:[%s1280 + $0x170] sm:$0xff]
    %v1297 = vsel %vm73, %v1281, -inf
    %v1298 = vsel %vm73, %v1282, -inf
    %v1299 = vsel %vm73, %v1283, -inf
    %v1300 = vmax.f32 %v1297, %v1299
    %v1301 = vsel %vm73, %v1284, -inf
    %v1302 = vmax.f32 %v1298, %v1301
    %v1303 = vsel %vm73, %v1285, -inf
    %v1304 = vmax.f32 %v1300, %v1303
    %v1305 = vsel %vm73, %v1286, -inf
    %v1306 = vmax.f32 %v1302, %v1305
    %v1307 = vsel %vm73, %v1287, -inf
    %v1308 = vmax.f32 %v1304, %v1307
    %v1309 = vsel %vm73, %v1288, -inf
    %v1310 = vmax.f32 %v1306, %v1309
    %v1311 = vmax.f32 %v1308, %v1310
    %v1312 = vsel %vm73, %v1289, -inf
    %v1313 = vsel %vm73, %v1290, -inf
    %v1314 = vsel %vm73, %v1291, -inf
    %v1315 = vmax.f32 %v1312, %v1314
    %v1316 = vsel %vm73, %v1292, -inf
    %v1317 = vmax.f32 %v1313, %v1316
    %v1318 = vsel %vm73, %v1293, -inf
    %v1319 = vmax.f32 %v1315, %v1318
    %v1320 = vsel %vm73, %v1294, -inf
    %v1321 = vmax.f32 %v1317, %v1320
    %v1322 = vsel %vm73, %v1295, -inf
    %v1323 = vmax.f32 %v1319, %v1322
    %v1324 = vsel %vm73, %v1296, -inf
    %v1325 = vmax.f32 %v1321, %v1324
    %v1326 = vmax.f32 %v1323, %v1325
    %v1327 = vsel %vm73, %v1311, -inf
    %v1328 = vrot.slane %v1327, 4
    %v1329 = vmax.f32 %v1327, %v1328
    %v1330 = vrot.slane %v1329, 2
    %v1331 = vmax.f32 %v1329, %v1330
    %v1332 = vrot.slane %v1331, 1
    %v1333 = vmax.f32 %v1331, %v1332
    %v1334 = vsel %vm73, %v1326, -inf
    %v1335 = vrot.slane %v1334, 4
    %v1336 = vmax.f32 %v1334, %v1335
    %v1337 = vrot.slane %v1336, 2
    %v1338 = vmax.f32 %v1336, %v1337
    %v1339 = vrot.slane %v1338, 1
    %v1340 = vmax.f32 %v1338, %v1339
    %v1341 = vmul.f32 %v1333, %v1333
    %v1342 = vmul.f32 %v1340, %v1340
    %v1345 = vsel %vm220, %v1342, %v1341
    %v1347 = vsel %vm223, %v1345, 0.0
    %1348 = vadd.xlane.f32.xlu0 %v1347
    %v1349 = vpop.xlane.xlu0 %1348
    %v1350 = vrsqrt.pop %v1349
    %v1351 = vmul.f32 %v1349, %v1350
    %vm1352 = vcmp.eq.f32.partialorder %v1349, inf
    %v1353 = vsel %vm1352, %v1349, %v1351
    %vm1354 = vcmp.eq.f32.partialorder %v1349, 0.0
    %v1355 = vand.u32 %v1349, 2147483648
    %v1356 = vsel %vm1354, %v1355, %v1353
    %v1357 = vadd.f32 %v1356, 1e-06
    %v1358 = vrcp.pop %v1357
    %v1360 = vrot.slane %v1358, 1
    %v1363 = vmul.f32 %v1333, %v1358
    %v1364 = vmul.f32 %v1340, %v1360
    %v1365 = vadd.f32 %v1278, %v1363
    %v1366 = vadd.f32 %v1279, %v1364
    %v1367 = vld [vmem:[%s1280 + $0x4] sm:$0xff]
    %v1368 = vld [vmem:[%s1280 + $0x14] sm:$0xff]
    %v1369 = vld [vmem:[%s1280 + $0x24] sm:$0xff]
    %v1370 = vld [vmem:[%s1280 + $0x34] sm:$0xff]
    %v1371 = vld [vmem:[%s1280 + $0x44] sm:$0xff]
    %v1372 = vld [vmem:[%s1280 + $0x54] sm:$0xff]
    %v1373 = vld [vmem:[%s1280 + $0x64] sm:$0xff]
    %v1374 = vld [vmem:[%s1280 + $0x74] sm:$0xff]
    %v1375 = vld [vmem:[%s1280 + $0x104] sm:$0xff]
    %v1376 = vld [vmem:[%s1280 + $0x114] sm:$0xff]
    %v1377 = vld [vmem:[%s1280 + $0x124] sm:$0xff]
    %v1378 = vld [vmem:[%s1280 + $0x134] sm:$0xff]
    %v1379 = vld [vmem:[%s1280 + $0x144] sm:$0xff]
    %v1380 = vld [vmem:[%s1280 + $0x154] sm:$0xff]
    %v1381 = vld [vmem:[%s1280 + $0x164] sm:$0xff]
    %v1382 = vld [vmem:[%s1280 + $0x174] sm:$0xff]
    %v1383 = vsel %vm73, %v1367, -inf
    %v1384 = vsel %vm73, %v1368, -inf
    %v1385 = vsel %vm73, %v1369, -inf
    %v1386 = vmax.f32 %v1383, %v1385
    %v1387 = vsel %vm73, %v1370, -inf
    %v1388 = vmax.f32 %v1384, %v1387
    %v1389 = vsel %vm73, %v1371, -inf
    %v1390 = vmax.f32 %v1386, %v1389
    %v1391 = vsel %vm73, %v1372, -inf
    %v1392 = vmax.f32 %v1388, %v1391
    %v1393 = vsel %vm73, %v1373, -inf
    %v1394 = vmax.f32 %v1390, %v1393
    %v1395 = vsel %vm73, %v1374, -inf
    %v1396 = vmax.f32 %v1392, %v1395
    %v1397 = vmax.f32 %v1394, %v1396
    %v1398 = vsel %vm73, %v1375, -inf
    %v1399 = vsel %vm73, %v1376, -inf
    %v1400 = vsel %vm73, %v1377, -inf
    %v1401 = vmax.f32 %v1398, %v1400
    %v1402 = vsel %vm73, %v1378, -inf
    %v1403 = vmax.f32 %v1399, %v1402
    %v1404 = vsel %vm73, %v1379, -inf
    %v1405 = vmax.f32 %v1401, %v1404
    %v1406 = vsel %vm73, %v1380, -inf
    %v1407 = vmax.f32 %v1403, %v1406
    %v1408 = vsel %vm73, %v1381, -inf
    %v1409 = vmax.f32 %v1405, %v1408
    %v1410 = vsel %vm73, %v1382, -inf
    %v1411 = vmax.f32 %v1407, %v1410
    %v1412 = vmax.f32 %v1409, %v1411
    %v1413 = vsel %vm73, %v1397, -inf
    %v1414 = vrot.slane %v1413, 4
    %v1415 = vmax.f32 %v1413, %v1414
    %v1416 = vrot.slane %v1415, 2
    %v1417 = vmax.f32 %v1415, %v1416
    %v1418 = vrot.slane %v1417, 1
    %v1419 = vmax.f32 %v1417, %v1418
    %v1420 = vsel %vm73, %v1412, -inf
    %v1421 = vrot.slane %v1420, 4
    %v1422 = vmax.f32 %v1420, %v1421
    %v1423 = vrot.slane %v1422, 2
    %v1424 = vmax.f32 %v1422, %v1423
    %v1425 = vrot.slane %v1424, 1
    %v1426 = vmax.f32 %v1424, %v1425
    %v1427 = vmul.f32 %v1419, %v1419
    %v1428 = vmul.f32 %v1426, %v1426
    %v1431 = vsel %vm220, %v1428, %v1427
    %v1433 = vsel %vm223, %v1431, 0.0
    %1434 = vadd.xlane.f32.xlu0 %v1433
    %v1435 = vpop.xlane.xlu0 %1434
    %v1436 = vrsqrt.pop %v1435
    %v1437 = vmul.f32 %v1435, %v1436
    %vm1438 = vcmp.eq.f32.partialorder %v1435, inf
    %v1439 = vsel %vm1438, %v1435, %v1437
    %vm1440 = vcmp.eq.f32.partialorder %v1435, 0.0
    %v1441 = vand.u32 %v1435, 2147483648
    %v1442 = vsel %vm1440, %v1441, %v1439
    %v1443 = vadd.f32 %v1442, 1e-06
    %v1444 = vrcp.pop %v1443
    %v1446 = vrot.slane %v1444, 1
    %v1449 = vmul.f32 %v1419, %v1444
    %v1450 = vmul.f32 %v1426, %v1446
    %v1451 = vadd.f32 %v1365, %v1449
    %v1452 = vadd.f32 %v1366, %v1450
    %v1453 = vld [vmem:[%s1280 + $0x8] sm:$0xff]
    %v1454 = vld [vmem:[%s1280 + $0x18] sm:$0xff]
    %v1455 = vld [vmem:[%s1280 + $0x28] sm:$0xff]
    %v1456 = vld [vmem:[%s1280 + $0x38] sm:$0xff]
    %v1457 = vld [vmem:[%s1280 + $0x48] sm:$0xff]
    %v1458 = vld [vmem:[%s1280 + $0x58] sm:$0xff]
    %v1459 = vld [vmem:[%s1280 + $0x68] sm:$0xff]
    %v1460 = vld [vmem:[%s1280 + $0x78] sm:$0xff]
    %v1461 = vld [vmem:[%s1280 + $0x108] sm:$0xff]
    %v1462 = vld [vmem:[%s1280 + $0x118] sm:$0xff]
    %v1463 = vld [vmem:[%s1280 + $0x128] sm:$0xff]
    %v1464 = vld [vmem:[%s1280 + $0x138] sm:$0xff]
    %v1465 = vld [vmem:[%s1280 + $0x148] sm:$0xff]
    %v1466 = vld [vmem:[%s1280 + $0x158] sm:$0xff]
    %v1467 = vld [vmem:[%s1280 + $0x168] sm:$0xff]
    %v1468 = vld [vmem:[%s1280 + $0x178] sm:$0xff]
    %v1469 = vsel %vm73, %v1453, -inf
    %v1470 = vsel %vm73, %v1454, -inf
    %v1471 = vsel %vm73, %v1455, -inf
    %v1472 = vmax.f32 %v1469, %v1471
    %v1473 = vsel %vm73, %v1456, -inf
    %v1474 = vmax.f32 %v1470, %v1473
    %v1475 = vsel %vm73, %v1457, -inf
    %v1476 = vmax.f32 %v1472, %v1475
    %v1477 = vsel %vm73, %v1458, -inf
    %v1478 = vmax.f32 %v1474, %v1477
    %v1479 = vsel %vm73, %v1459, -inf
    %v1480 = vmax.f32 %v1476, %v1479
    %v1481 = vsel %vm73, %v1460, -inf
    %v1482 = vmax.f32 %v1478, %v1481
    %v1483 = vmax.f32 %v1480, %v1482
    %v1484 = vsel %vm73, %v1461, -inf
    %v1485 = vsel %vm73, %v1462, -inf
    %v1486 = vsel %vm73, %v1463, -inf
    %v1487 = vmax.f32 %v1484, %v1486
    %v1488 = vsel %vm73, %v1464, -inf
    %v1489 = vmax.f32 %v1485, %v1488
    %v1490 = vsel %vm73, %v1465, -inf
    %v1491 = vmax.f32 %v1487, %v1490
    %v1492 = vsel %vm73, %v1466, -inf
    %v1493 = vmax.f32 %v1489, %v1492
    %v1494 = vsel %vm73, %v1467, -inf
    %v1495 = vmax.f32 %v1491, %v1494
    %v1496 = vsel %vm73, %v1468, -inf
    %v1497 = vmax.f32 %v1493, %v1496
    %v1498 = vmax.f32 %v1495, %v1497
    %v1499 = vsel %vm73, %v1483, -inf
    %v1500 = vrot.slane %v1499, 4
    %v1501 = vmax.f32 %v1499, %v1500
    %v1502 = vrot.slane %v1501, 2
    %v1503 = vmax.f32 %v1501, %v1502
    %v1504 = vrot.slane %v1503, 1
    %v1505 = vmax.f32 %v1503, %v1504
    %v1506 = vsel %vm73, %v1498, -inf
    %v1507 = vrot.slane %v1506, 4
    %v1508 = vmax.f32 %v1506, %v1507
    %v1509 = vrot.slane %v1508, 2
    %v1510 = vmax.f32 %v1508, %v1509
    %v1511 = vrot.slane %v1510, 1
    %v1512 = vmax.f32 %v1510, %v1511
    %v1513 = vmul.f32 %v1505, %v1505
    %v1514 = vmul.f32 %v1512, %v1512
    %v1517 = vsel %vm220, %v1514, %v1513
    %v1519 = vsel %vm223, %v1517, 0.0
    %1520 = vadd.xlane.f32.xlu0 %v1519
    %v1521 = vpop.xlane.xlu0 %1520
    %v1522 = vrsqrt.pop %v1521
    %v1523 = vmul.f32 %v1521, %v1522
    %vm1524 = vcmp.eq.f32.partialorder %v1521, inf
    %v1525 = vsel %vm1524, %v1521, %v1523
    %vm1526 = vcmp.eq.f32.partialorder %v1521, 0.0
    %v1527 = vand.u32 %v1521, 2147483648
    %v1528 = vsel %vm1526, %v1527, %v1525
    %v1529 = vadd.f32 %v1528, 1e-06
    %v1530 = vrcp.pop %v1529
    %v1532 = vrot.slane %v1530, 1
    %v1535 = vmul.f32 %v1505, %v1530
    %v1536 = vmul.f32 %v1512, %v1532
    %v1537 = vadd.f32 %v1451, %v1535
    %v1538 = vadd.f32 %v1452, %v1536
    %v1541 = vrot.slane %v1538, 7
    %v1542 = vsel %vm220, %v1541, %v1537
    %1544 = vst.msk [vmem:[#allocation2] sm:$0x3] %vm223, %v1542
    // Predicated region
    $region6: #{rmac_nhwc.1} parent=1 // pred_check
      _
    $region7: #{rmac_nhwc.1} parent=1 // pred_check_branch
      %1546 = sbr.rel (0) target = $region9
    $region8: #{rmac_nhwc.1} parent=1 // pred_region
      %s1548 = ssub.s32 32, 32
      %1549 = vsyncadd [#allocation3], %s1548
      %s1551 = sshll.u32 [#allocation2], 4
      %s1552 = int_to_ptr.vmem [resolvable:$true] %s1551
      %1554 = dma.vmem_to_hbm [thread:$0]  %s1552, 32, %s1, [#allocation3]
    $region9: #{rmac_nhwc.1} parent=1 // pred_fallthru
      _
    // Predicated region
    $region10: #{rmac_nhwc.1} parent=1 // pred_check
      _
    $region11: #{rmac_nhwc.1} parent=1 // pred_check_branch
      %1556 = sbr.rel (0) target = $region13
    $region12: #{rmac_nhwc.1} parent=1 // pred_region
      %1557 = dma.done [#allocation3], 32
    $region13: #{rmac_nhwc.1} parent=1 // pred_fallthru
      _
    %1558 = vsyncpa [#allocation3], 1

</llo_original>
